<compile_context>
chip_gen: v6e
topology: v6e:2x2x1
jax: 0.10.0
libtpu: 0.0.40
codegen_flags: <defaults>
</compile_context>

<pallas_src>
import functools

import jax
import jax.numpy as jnp
from jax.experimental import pallas as pl
from jax.experimental.pallas import tpu as pltpu


def _round_up(x, m):
    return ((x + m - 1) // m) * m


def relation_gcn_kernel(
    clones_ref,      # (1, R, Hp)       bf16
    food_ref,        # (1, R, Hp)       bf16
    thorn_rel_ref,   # (1, R*Tp, Hp)    bf16
    team_rel_ref,    # (1, R*Cp, Hp)    bf16
    enemy_rel_ref,   # (1, R*Cp, Hp)    bf16
    thorn_mask_ref,  # (1, Tp, Hp)      f32   (pre-broadcast over lanes)
    clone_mask_ref,  # (1, Cp, Hp)      f32   (pre-broadcast over lanes)
    w_rel_ref,       # (3, Hp, Hp)      bf16  [thorn, team, enemy]
    w_agg_ref,       # (5*Hp, Hp)       bf16  [clones|food|thorn|team|enemy] rows
    bias_ref,        # (8, Hp)          f32   rows 0..3 = thorn, team, enemy, agg
    out_ref,         # (1, R, Hp)       f32
):
    rows = clones_ref.shape[1]
    hp = clones_ref.shape[2]

    def relation_path(x_ref, idx, mask_ref):
        r = mask_ref.shape[1]
        x = x_ref[0]                                                 # (R*r, Hp) bf16
        y = jnp.dot(x, w_rel_ref[idx], preferred_element_type=jnp.float32)
        y = jnp.maximum(y + bias_ref[idx:idx + 1, :], 0.0)           # Linear + ReLU
        y = y.reshape(rows, r, hp) * mask_ref[...]                   # free split + VPU mask
        return jnp.max(y, axis=1)                                    # (R, Hp) f32

    thorn_feat = relation_path(thorn_rel_ref, 0, thorn_mask_ref)
    team_feat = relation_path(team_rel_ref, 1, clone_mask_ref)
    enemy_feat = relation_path(enemy_rel_ref, 2, clone_mask_ref)

    # Aggregation MLP on concat([clones, food, thorn, team, enemy], axis=-1):
    # expressed as five 128-wide-K partial matmuls against lane/sublane-aligned
    # row blocks of the stacked weight (avoids an in-kernel concat relayout).
    w = w_agg_ref
    acc = jnp.dot(clones_ref[0], w[0 * hp:1 * hp, :], preferred_element_type=jnp.float32)
    acc = acc + jnp.dot(food_ref[0], w[1 * hp:2 * hp, :], preferred_element_type=jnp.float32)
    acc = acc + jnp.dot(thorn_feat.astype(jnp.bfloat16), w[2 * hp:3 * hp, :],
                        preferred_element_type=jnp.float32)
    acc = acc + jnp.dot(team_feat.astype(jnp.bfloat16), w[3 * hp:4 * hp, :],
                        preferred_element_type=jnp.float32)
    acc = acc + jnp.dot(enemy_feat.astype(jnp.bfloat16), w[4 * hp:5 * hp, :],
                        preferred_element_type=jnp.float32)
    out_ref[0] = jnp.maximum(acc + bias_ref[3:4, :], 0.0).astype(out_ref.dtype)


@functools.partial(jax.jit, static_argnames=("row_tile",))
def relation_gcn(clone_with_food_relation, clone_with_thorn_relation, clones,
                 clone_with_team_relation, clone_with_enemy_relation,
                 thorn_mask, clone_mask, params, row_tile=None):
    b, c, h = clones.shape
    t = clone_with_thorn_relation.shape[2]

    hp = max(128, _round_up(h, 128))   # lane-dense hidden dim
    tp = _round_up(t, 8)               # sublane-aligned thorn axis
    cp = _round_up(c, 8)               # sublane-aligned reduced clone axis

    if row_tile is None:
        row_tile = c                   # at prod sizes pick a divisor of C (multiple of 8)
    assert c % row_tile == 0 and (row_tile % 8 == 0 or row_tile == c)
    n_ct = c // row_tile

    f32, bf16 = jnp.float32, jnp.bfloat16

    def pad_feat(x):  # pad last (feature) dim h -> hp
        return jnp.pad(x, [(0, 0)] * (x.ndim - 1) + [(0, hp - h)])

    clones_p = pad_feat(clones).astype(bf16)
    food_p = pad_feat(clone_with_food_relation).astype(bf16)

    thorn_p = jnp.pad(clone_with_thorn_relation,
                      ((0, 0), (0, 0), (0, tp - t), (0, hp - h))).astype(bf16)
    thorn_p = thorn_p.reshape(b, c * tp, hp)
    team_p = jnp.pad(clone_with_team_relation,
                     ((0, 0), (0, 0), (0, cp - c), (0, hp - h))).astype(bf16)
    team_p = team_p.reshape(b, c * cp, hp)
    enemy_p = jnp.pad(clone_with_enemy_relation,
                      ((0, 0), (0, 0), (0, cp - c), (0, hp - h))).astype(bf16)
    enemy_p = enemy_p.reshape(b, c * cp, hp)

    # Masks: pad the reduced axis with zeros (padded rows contribute 0 to the
    # max, matching the un-padded semantics) and pre-broadcast over lanes.
    thorn_mask_p = jnp.broadcast_to(
        jnp.pad(thorn_mask.astype(f32), ((0, 0), (0, tp - t)))[:, :, None], (b, tp, hp))
    clone_mask_p = jnp.broadcast_to(
        jnp.pad(clone_mask.astype(f32), ((0, 0), (0, cp - c)))[:, :, None], (b, cp, hp))

    (w_th, b_th, w_tm, b_tm, w_en, b_en, w_agg, b_agg) = params
    pad_w = lambda w: jnp.pad(w, ((0, hp - h), (0, hp - h)))
    w_rel = jnp.stack([pad_w(w_th), pad_w(w_tm), pad_w(w_en)]).astype(bf16)

    w_agg_p = jnp.zeros((5 * hp, hp), f32)
    for k in range(5):
        w_agg_p = w_agg_p.at[k * hp:k * hp + h, :h].set(w_agg[k * h:(k + 1) * h, :])
    w_agg_p = w_agg_p.astype(bf16)

    pad_b = lambda v: jnp.pad(v.astype(f32), (0, hp - h))
    bias = jnp.zeros((8, hp), f32)
    bias = bias.at[0].set(pad_b(b_th)).at[1].set(pad_b(b_tm))
    bias = bias.at[2].set(pad_b(b_en)).at[3].set(pad_b(b_agg))

    grid_spec = pltpu.PrefetchScalarGridSpec(
        num_scalar_prefetch=0,
        grid=(b, n_ct),
        in_specs=[
            pl.BlockSpec((1, row_tile, hp), lambda bi, ci: (bi, ci, 0)),       # clones
            pl.BlockSpec((1, row_tile, hp), lambda bi, ci: (bi, ci, 0)),       # food rel
            pl.BlockSpec((1, row_tile * tp, hp), lambda bi, ci: (bi, ci, 0)),  # thorn rel
            pl.BlockSpec((1, row_tile * cp, hp), lambda bi, ci: (bi, ci, 0)),  # team rel
            pl.BlockSpec((1, row_tile * cp, hp), lambda bi, ci: (bi, ci, 0)),  # enemy rel
            pl.BlockSpec((1, tp, hp), lambda bi, ci: (bi, 0, 0)),              # thorn mask
            pl.BlockSpec((1, cp, hp), lambda bi, ci: (bi, 0, 0)),              # clone mask
            pl.BlockSpec((3, hp, hp), lambda bi, ci: (0, 0, 0)),               # stacked rel W
            pl.BlockSpec((5 * hp, hp), lambda bi, ci: (0, 0)),                 # agg W
            pl.BlockSpec((8, hp), lambda bi, ci: (0, 0)),                      # stacked biases
        ],
        out_specs=pl.BlockSpec((1, row_tile, hp), lambda bi, ci: (bi, ci, 0)),
    )

    out_padded = pl.pallas_call(
        relation_gcn_kernel,
        out_shape=jax.ShapeDtypeStruct((b, c, hp), f32),
        grid_spec=grid_spec,
        compiler_params=pltpu.CompilerParams(
            dimension_semantics=("parallel", "parallel")),
    )(clones_p, food_p, thorn_p, team_p, enemy_p,
      thorn_mask_p, clone_mask_p, w_rel, w_agg_p, bias)

    return out_padded[:, :, :h]


def relation_gcn_reference(food, thorn_rel, clones, team_rel, enemy_rel,
                           thorn_mask, clone_mask, params):
    """Plain-JAX replica of the PyTorch forward (matmul operands cast to bf16
    with f32 accumulation, mirroring the kernel's precision policy)."""
    (w_th, b_th, w_tm, b_tm, w_en, b_en, w_agg, b_agg) = params
    b, c, h = clones.shape
    t = thorn_rel.shape[2]
    relu = lambda x: jnp.maximum(x, 0.0)
    bf = lambda x: x.astype(jnp.bfloat16)

    def mlp(x, w, bias):
        y = jnp.dot(bf(x).reshape(-1, x.shape[-1]), bf(w),
                    preferred_element_type=jnp.float32)
        return relu(y.reshape(x.shape[:-1] + (w.shape[-1],)) + bias)

    th = mlp(thorn_rel, w_th, b_th) * thorn_mask.reshape(b, 1, t, 1)
    th = th.max(axis=2)
    tm = mlp(team_rel, w_tm, b_tm) * clone_mask.reshape(b, 1, c, 1)
    tm = tm.max(axis=2)
    en = mlp(enemy_rel, w_en, b_en) * clone_mask.reshape(b, 1, c, 1)
    en = en.max(axis=2)
    agg = jnp.concatenate([clones, food, th, tm, en], axis=2)
    return mlp(agg, w_agg, b_agg)


def init_params(key, h):
    keys = jax.random.split(key, 8)
    scale = 0.1
    w_th = scale * jax.random.normal(keys[0], (h, h), jnp.float32)
    b_th = scale * jax.random.normal(keys[1], (h,), jnp.float32)
    w_tm = scale * jax.random.normal(keys[2], (h, h), jnp.float32)
    b_tm = scale * jax.random.normal(keys[3], (h,), jnp.float32)
    w_en = scale * jax.random.normal(keys[4], (h, h), jnp.float32)
    b_en = scale * jax.random.normal(keys[5], (h,), jnp.float32)
    w_agg = scale * jax.random.normal(keys[6], (5 * h, h), jnp.float32)
    b_agg = scale * jax.random.normal(keys[7], (h,), jnp.float32)
    return (w_th, b_th, w_tm, b_tm, w_en, b_en, w_agg, b_agg)


if __name__ == "__main__":
    B, C, T, H = 2, 8, 4, 32
    root = jax.random.PRNGKey(0)
    ks = jax.random.split(root, 8)

    clones = jax.random.normal(ks[0], (B, C, H), jnp.float32)
    food_rel = jax.random.normal(ks[1], (B, C, H), jnp.float32)
    thorn_rel = jax.random.normal(ks[2], (B, C, T, H), jnp.float32)
    team_rel = jax.random.normal(ks[3], (B, C, C, H), jnp.float32)
    enemy_rel = jax.random.normal(ks[4], (B, C, C, H), jnp.float32)
    thorn_mask = jax.random.bernoulli(ks[5], 0.7, (B, T)).astype(jnp.float32)
    clone_mask = jax.random.bernoulli(ks[6], 0.7, (B, C)).astype(jnp.float32)
    params = init_params(ks[7], H)

    out = relation_gcn(food_rel, thorn_rel, clones, team_rel, enemy_rel,
                       thorn_mask, clone_mask, params)
    out = jax.block_until_ready(out)

    ref = relation_gcn_reference(food_rel, thorn_rel, clones, team_rel, enemy_rel,
                                 thorn_mask, clone_mask, params)
    assert out.shape == (B, C, H)
    assert jnp.allclose(out, ref, atol=1e-2, rtol=1e-2), "mismatch vs reference"

    print("KERNEL_OK")
</pallas_src>

<mosaic_0001>
module attributes {stable_mosaic.version = 11 : i64} {
  func.func @relation_gcn_kernel(%arg0: i32, %arg1: i32, %arg2: memref<1x8x128xbf16, #tpu.memory_space<vmem>>, %arg3: memref<1x8x128xbf16, #tpu.memory_space<vmem>>, %arg4: memref<1x64x128xbf16, #tpu.memory_space<vmem>>, %arg5: memref<1x64x128xbf16, #tpu.memory_space<vmem>>, %arg6: memref<1x64x128xbf16, #tpu.memory_space<vmem>>, %arg7: memref<1x8x128xf32, #tpu.memory_space<vmem>>, %arg8: memref<1x8x128xf32, #tpu.memory_space<vmem>>, %arg9: memref<3x128x128xbf16, #tpu.memory_space<vmem>>, %arg10: memref<640x128xbf16, #tpu.memory_space<vmem>>, %arg11: memref<8x128xf32, #tpu.memory_space<vmem>>, %arg12: memref<1x8x128xf32, #tpu.memory_space<vmem>>) attributes {dimension_semantics = [#tpu.dimension_semantics<parallel>, #tpu.dimension_semantics<parallel>], iteration_bounds = array<i64: 2, 1>, scalar_prefetch = 0 : i64, scratch_operands = 0 : i64, tpu.core_type = #tpu.core_type<tc>, window_params = [{transform_indices = @transform_0, window_bounds = array<i64: 1, 8, 128>}, {transform_indices = @transform_1, window_bounds = array<i64: 1, 8, 128>}, {transform_indices = @transform_2, window_bounds = array<i64: 1, 64, 128>}, {transform_indices = @transform_3, window_bounds = array<i64: 1, 64, 128>}, {transform_indices = @transform_4, window_bounds = array<i64: 1, 64, 128>}, {transform_indices = @transform_5, window_bounds = array<i64: 1, 8, 128>}, {transform_indices = @transform_6, window_bounds = array<i64: 1, 8, 128>}, {pipeline_mode = #tpu.pipeline_mode<synchronous>, transform_indices = @transform_7, window_bounds = array<i64: 3, 128, 128>}, {pipeline_mode = #tpu.pipeline_mode<synchronous>, transform_indices = @transform_8, window_bounds = array<i64: 640, 128>}, {pipeline_mode = #tpu.pipeline_mode<synchronous>, transform_indices = @transform_9, window_bounds = array<i64: 8, 128>}, {transform_indices = @transform_10, window_bounds = array<i64: 1, 8, 128>}]} {
    %c0 = arith.constant 0 : index
    %c0_0 = arith.constant 0 : index
    %c0_1 = arith.constant 0 : index
    %0 = vector.load %arg4[%c0, %c0_0, %c0_1] : memref<1x64x128xbf16, #tpu.memory_space<vmem>>, vector<1x64x128xbf16>
    %1 = vector.shape_cast %0 : vector<1x64x128xbf16> to vector<64x128xbf16>
    %c0_2 = arith.constant 0 : index
    %c0_3 = arith.constant 0 : index
    %c0_4 = arith.constant 0 : index
    %2 = vector.load %arg9[%c0_2, %c0_3, %c0_4] : memref<3x128x128xbf16, #tpu.memory_space<vmem>>, vector<1x128x128xbf16>
    %3 = vector.shape_cast %2 : vector<1x128x128xbf16> to vector<128x128xbf16>
    %cst = arith.constant dense<0.000000e+00> : vector<64x128xf32>
    %4 = tpu.matmul %1, %3, %cst {dimension_numbers = #tpu.dot_dimension_numbers<[1], [0], [0], [1], [0, 0, 1, 1], [], []>} : vector<64x128xbf16>, vector<128x128xbf16>, vector<64x128xf32> -> vector<64x128xf32>
    %c0_5 = arith.constant 0 : index
    %c0_6 = arith.constant 0 : index
    %5 = vector.load %arg11[%c0_5, %c0_6] : memref<8x128xf32, #tpu.memory_space<vmem>>, vector<1x128xf32>
    %6 = vector.broadcast %5 : vector<1x128xf32> to vector<64x128xf32>
    %7 = arith.addf %4, %6 : vector<64x128xf32>
    %cst_7 = arith.constant 0.000000e+00 : f32
    %8 = vector.broadcast %cst_7 : f32 to vector<64x128xf32>
    %9 = arith.maximumf %7, %8 : vector<64x128xf32>
    %10 = vector.shape_cast %9 : vector<64x128xf32> to vector<8x8x128xf32>
    %c0_8 = arith.constant 0 : index
    %c0_9 = arith.constant 0 : index
    %c0_10 = arith.constant 0 : index
    %11 = vector.load %arg7[%c0_8, %c0_9, %c0_10] : memref<1x8x128xf32, #tpu.memory_space<vmem>>, vector<1x8x128xf32>
    %12 = vector.broadcast %11 : vector<1x8x128xf32> to vector<8x8x128xf32>
    %13 = arith.mulf %10, %12 : vector<8x8x128xf32>
    %cst_11 = arith.constant dense<0xFF800000> : vector<8x128xf32>
    %14 = vector.multi_reduction <maximumf>, %13, %cst_11 [1] : vector<8x8x128xf32> to vector<8x128xf32>
    %c0_12 = arith.constant 0 : index
    %c0_13 = arith.constant 0 : index
    %c0_14 = arith.constant 0 : index
    %15 = vector.load %arg5[%c0_12, %c0_13, %c0_14] : memref<1x64x128xbf16, #tpu.memory_space<vmem>>, vector<1x64x128xbf16>
    %16 = vector.shape_cast %15 : vector<1x64x128xbf16> to vector<64x128xbf16>
    %c1 = arith.constant 1 : index
    %c0_15 = arith.constant 0 : index
    %c0_16 = arith.constant 0 : index
    %17 = vector.load %arg9[%c1, %c0_15, %c0_16] : memref<3x128x128xbf16, #tpu.memory_space<vmem>>, vector<1x128x128xbf16>
    %18 = vector.shape_cast %17 : vector<1x128x128xbf16> to vector<128x128xbf16>
    %cst_17 = arith.constant dense<0.000000e+00> : vector<64x128xf32>
    %19 = tpu.matmul %16, %18, %cst_17 {dimension_numbers = #tpu.dot_dimension_numbers<[1], [0], [0], [1], [0, 0, 1, 1], [], []>} : vector<64x128xbf16>, vector<128x128xbf16>, vector<64x128xf32> -> vector<64x128xf32>
    %c1_18 = arith.constant 1 : index
    %c0_19 = arith.constant 0 : index
    %20 = vector.load %arg11[%c1_18, %c0_19] : memref<8x128xf32, #tpu.memory_space<vmem>>, vector<1x128xf32>
    %21 = vector.broadcast %20 : vector<1x128xf32> to vector<64x128xf32>
    %22 = arith.addf %19, %21 : vector<64x128xf32>
    %cst_20 = arith.constant 0.000000e+00 : f32
    %23 = vector.broadcast %cst_20 : f32 to vector<64x128xf32>
    %24 = arith.maximumf %22, %23 : vector<64x128xf32>
    %25 = vector.shape_cast %24 : vector<64x128xf32> to vector<8x8x128xf32>
    %c0_21 = arith.constant 0 : index
    %c0_22 = arith.constant 0 : index
    %c0_23 = arith.constant 0 : index
    %26 = vector.load %arg8[%c0_21, %c0_22, %c0_23] : memref<1x8x128xf32, #tpu.memory_space<vmem>>, vector<1x8x128xf32>
    %27 = vector.broadcast %26 : vector<1x8x128xf32> to vector<8x8x128xf32>
    %28 = arith.mulf %25, %27 : vector<8x8x128xf32>
    %cst_24 = arith.constant dense<0xFF800000> : vector<8x128xf32>
    %29 = vector.multi_reduction <maximumf>, %28, %cst_24 [1] : vector<8x8x128xf32> to vector<8x128xf32>
    %c0_25 = arith.constant 0 : index
    %c0_26 = arith.constant 0 : index
    %c0_27 = arith.constant 0 : index
    %30 = vector.load %arg6[%c0_25, %c0_26, %c0_27] : memref<1x64x128xbf16, #tpu.memory_space<vmem>>, vector<1x64x128xbf16>
    %31 = vector.shape_cast %30 : vector<1x64x128xbf16> to vector<64x128xbf16>
    %c2 = arith.constant 2 : index
    %c0_28 = arith.constant 0 : index
    %c0_29 = arith.constant 0 : index
    %32 = vector.load %arg9[%c2, %c0_28, %c0_29] : memref<3x128x128xbf16, #tpu.memory_space<vmem>>, vector<1x128x128xbf16>
    %33 = vector.shape_cast %32 : vector<1x128x128xbf16> to vector<128x128xbf16>
    %cst_30 = arith.constant dense<0.000000e+00> : vector<64x128xf32>
    %34 = tpu.matmul %31, %33, %cst_30 {dimension_numbers = #tpu.dot_dimension_numbers<[1], [0], [0], [1], [0, 0, 1, 1], [], []>} : vector<64x128xbf16>, vector<128x128xbf16>, vector<64x128xf32> -> vector<64x128xf32>
    %c2_31 = arith.constant 2 : index
    %c0_32 = arith.constant 0 : index
    %35 = vector.load %arg11[%c2_31, %c0_32] : memref<8x128xf32, #tpu.memory_space<vmem>>, vector<1x128xf32>
    %36 = vector.broadcast %35 : vector<1x128xf32> to vector<64x128xf32>
    %37 = arith.addf %34, %36 : vector<64x128xf32>
    %cst_33 = arith.constant 0.000000e+00 : f32
    %38 = vector.broadcast %cst_33 : f32 to vector<64x128xf32>
    %39 = arith.maximumf %37, %38 : vector<64x128xf32>
    %40 = vector.shape_cast %39 : vector<64x128xf32> to vector<8x8x128xf32>
    %c0_34 = arith.constant 0 : index
    %c0_35 = arith.constant 0 : index
    %c0_36 = arith.constant 0 : index
    %41 = vector.load %arg8[%c0_34, %c0_35, %c0_36] : memref<1x8x128xf32, #tpu.memory_space<vmem>>, vector<1x8x128xf32>
    %42 = vector.broadcast %41 : vector<1x8x128xf32> to vector<8x8x128xf32>
    %43 = arith.mulf %40, %42 : vector<8x8x128xf32>
    %cst_37 = arith.constant dense<0xFF800000> : vector<8x128xf32>
    %44 = vector.multi_reduction <maximumf>, %43, %cst_37 [1] : vector<8x8x128xf32> to vector<8x128xf32>
    %c0_38 = arith.constant 0 : index
    %c0_39 = arith.constant 0 : index
    %c0_40 = arith.constant 0 : index
    %45 = vector.load %arg2[%c0_38, %c0_39, %c0_40] : memref<1x8x128xbf16, #tpu.memory_space<vmem>>, vector<1x8x128xbf16>
    %46 = vector.shape_cast %45 : vector<1x8x128xbf16> to vector<8x128xbf16>
    %c0_41 = arith.constant 0 : index
    %c0_42 = arith.constant 0 : index
    %47 = vector.load %arg10[%c0_41, %c0_42] : memref<640x128xbf16, #tpu.memory_space<vmem>>, vector<128x128xbf16>
    %cst_43 = arith.constant dense<0.000000e+00> : vector<8x128xf32>
    %48 = tpu.matmul %46, %47, %cst_43 {dimension_numbers = #tpu.dot_dimension_numbers<[1], [0], [0], [1], [0, 0, 1, 1], [], []>} : vector<8x128xbf16>, vector<128x128xbf16>, vector<8x128xf32> -> vector<8x128xf32>
    %c0_44 = arith.constant 0 : index
    %c0_45 = arith.constant 0 : index
    %c0_46 = arith.constant 0 : index
    %49 = vector.load %arg3[%c0_44, %c0_45, %c0_46] : memref<1x8x128xbf16, #tpu.memory_space<vmem>>, vector<1x8x128xbf16>
    %50 = vector.shape_cast %49 : vector<1x8x128xbf16> to vector<8x128xbf16>
    %c128 = arith.constant 128 : index
    %c0_47 = arith.constant 0 : index
    %51 = vector.load %arg10[%c128, %c0_47] : memref<640x128xbf16, #tpu.memory_space<vmem>>, vector<128x128xbf16>
    %cst_48 = arith.constant dense<0.000000e+00> : vector<8x128xf32>
    %52 = tpu.matmul %50, %51, %cst_48 {dimension_numbers = #tpu.dot_dimension_numbers<[1], [0], [0], [1], [0, 0, 1, 1], [], []>} : vector<8x128xbf16>, vector<128x128xbf16>, vector<8x128xf32> -> vector<8x128xf32>
    %53 = arith.addf %48, %52 : vector<8x128xf32>
    %54 = arith.truncf %14 : vector<8x128xf32> to vector<8x128xbf16>
    %c256 = arith.constant 256 : index
    %c0_49 = arith.constant 0 : index
    %55 = vector.load %arg10[%c256, %c0_49] : memref<640x128xbf16, #tpu.memory_space<vmem>>, vector<128x128xbf16>
    %cst_50 = arith.constant dense<0.000000e+00> : vector<8x128xf32>
    %56 = tpu.matmul %54, %55, %cst_50 {dimension_numbers = #tpu.dot_dimension_numbers<[1], [0], [0], [1], [0, 0, 1, 1], [], []>} : vector<8x128xbf16>, vector<128x128xbf16>, vector<8x128xf32> -> vector<8x128xf32>
    %57 = arith.addf %53, %56 : vector<8x128xf32>
    %58 = arith.truncf %29 : vector<8x128xf32> to vector<8x128xbf16>
    %c384 = arith.constant 384 : index
    %c0_51 = arith.constant 0 : index
    %59 = vector.load %arg10[%c384, %c0_51] : memref<640x128xbf16, #tpu.memory_space<vmem>>, vector<128x128xbf16>
    %cst_52 = arith.constant dense<0.000000e+00> : vector<8x128xf32>
    %60 = tpu.matmul %58, %59, %cst_52 {dimension_numbers = #tpu.dot_dimension_numbers<[1], [0], [0], [1], [0, 0, 1, 1], [], []>} : vector<8x128xbf16>, vector<128x128xbf16>, vector<8x128xf32> -> vector<8x128xf32>
    %61 = arith.addf %57, %60 : vector<8x128xf32>
    %62 = arith.truncf %44 : vector<8x128xf32> to vector<8x128xbf16>
    %c512 = arith.constant 512 : index
    %c0_53 = arith.constant 0 : index
    %63 = vector.load %arg10[%c512, %c0_53] : memref<640x128xbf16, #tpu.memory_space<vmem>>, vector<128x128xbf16>
    %cst_54 = arith.constant dense<0.000000e+00> : vector<8x128xf32>
    %64 = tpu.matmul %62, %63, %cst_54 {dimension_numbers = #tpu.dot_dimension_numbers<[1], [0], [0], [1], [0, 0, 1, 1], [], []>} : vector<8x128xbf16>, vector<128x128xbf16>, vector<8x128xf32> -> vector<8x128xf32>
    %65 = arith.addf %61, %64 : vector<8x128xf32>
    %c3 = arith.constant 3 : index
    %c0_55 = arith.constant 0 : index
    %66 = vector.load %arg11[%c3, %c0_55] : memref<8x128xf32, #tpu.memory_space<vmem>>, vector<1x128xf32>
    %67 = vector.broadcast %66 : vector<1x128xf32> to vector<8x128xf32>
    %68 = arith.addf %65, %67 : vector<8x128xf32>
    %cst_56 = arith.constant 0.000000e+00 : f32
    %69 = vector.broadcast %cst_56 : f32 to vector<8x128xf32>
    %70 = arith.maximumf %68, %69 : vector<8x128xf32>
    %c0_57 = arith.constant 0 : index
    %c0_58 = arith.constant 0 : index
    %c0_59 = arith.constant 0 : index
    %71 = vector.load %arg12[%c0_57, %c0_58, %c0_59] : memref<1x8x128xf32, #tpu.memory_space<vmem>>, vector<1x8x128xf32>
    %72 = vector.shape_cast %71 : vector<1x8x128xf32> to vector<8x128xf32>
    %73 = vector.shape_cast %70 : vector<8x128xf32> to vector<1x8x128xf32>
    tpu.vector_store %arg12[%c0_57, %c0_58, %c0_59], %73 {strides = array<i32>} : memref<1x8x128xf32, #tpu.memory_space<vmem>>, vector<1x8x128xf32>,
    return
  }
  func.func @transform_0(%arg0: i32, %arg1: i32) -> (i32, i32, i32) {
    %c0_i32 = arith.constant 0 : i32
    %c0_i32_0 = arith.constant 0 : i32
    return %arg0, %arg1, %c0_i32 : i32, i32, i32
  }
  func.func @transform_1(%arg0: i32, %arg1: i32) -> (i32, i32, i32) {
    %c0_i32 = arith.constant 0 : i32
    %c0_i32_0 = arith.constant 0 : i32
    return %arg0, %arg1, %c0_i32 : i32, i32, i32
  }
  func.func @transform_2(%arg0: i32, %arg1: i32) -> (i32, i32, i32) {
    %c0_i32 = arith.constant 0 : i32
    %c0_i32_0 = arith.constant 0 : i32
    return %arg0, %arg1, %c0_i32 : i32, i32, i32
  }
  func.func @transform_3(%arg0: i32, %arg1: i32) -> (i32, i32, i32) {
    %c0_i32 = arith.constant 0 : i32
    %c0_i32_0 = arith.constant 0 : i32
    return %arg0, %arg1, %c0_i32 : i32, i32, i32
  }
  func.func @transform_4(%arg0: i32, %arg1: i32) -> (i32, i32, i32) {
    %c0_i32 = arith.constant 0 : i32
    %c0_i32_0 = arith.constant 0 : i32
    return %arg0, %arg1, %c0_i32 : i32, i32, i32
  }
  func.func @transform_5(%arg0: i32, %arg1: i32) -> (i32, i32, i32) {
    %c0_i32 = arith.constant 0 : i32
    %c0_i32_0 = arith.constant 0 : i32
    %c0_i32_1 = arith.constant 0 : i32
    return %arg0, %c0_i32, %c0_i32_0 : i32, i32, i32
  }
  func.func @transform_6(%arg0: i32, %arg1: i32) -> (i32, i32, i32) {
    %c0_i32 = arith.constant 0 : i32
    %c0_i32_0 = arith.constant 0 : i32
    %c0_i32_1 = arith.constant 0 : i32
    return %arg0, %c0_i32, %c0_i32_0 : i32, i32, i32
  }
  func.func @transform_7(%arg0: i32, %arg1: i32) -> (i32, i32, i32) {
    %c0_i32 = arith.constant 0 : i32
    %c0_i32_0 = arith.constant 0 : i32
    %c0_i32_1 = arith.constant 0 : i32
    %c0_i32_2 = arith.constant 0 : i32
    return %c0_i32, %c0_i32_0, %c0_i32_1 : i32, i32, i32
  }
  func.func @transform_8(%arg0: i32, %arg1: i32) -> (i32, i32) {
    %c0_i32 = arith.constant 0 : i32
    %c0_i32_0 = arith.constant 0 : i32
    %c0_i32_1 = arith.constant 0 : i32
    return %c0_i32, %c0_i32_0 : i32, i32
  }
  func.func @transform_9(%arg0: i32, %arg1: i32) -> (i32, i32) {
    %c0_i32 = arith.constant 0 : i32
    %c0_i32_0 = arith.constant 0 : i32
    %c0_i32_1 = arith.constant 0 : i32
    return %c0_i32, %c0_i32_0 : i32, i32
  }
  func.func @transform_10(%arg0: i32, %arg1: i32) -> (i32, i32, i32) {
    %c0_i32 = arith.constant 0 : i32
    %c0_i32_0 = arith.constant 0 : i32
    return %arg0, %arg1, %c0_i32 : i32, i32, i32
  }
}

</mosaic_0001>

<llo_original>
// kernel: relation_gcn.1
$region0: #{relation_gcn.1}
  #allocation0 [shape = 'u32[]', space=smem, size = 0x4, offset = 0x4, fixed_abs, tag = 'smem constant byte address 0x4 - core index']
  #allocation1 [shape = 'u32[144,128]{1,0:T(1,128)}', space=vmem, size = 0x12000, scoped, tag = 'internal scratch']
  %s0 = inlined_call_operand.vmem [shape: bf16[2,8,128], index: 0, kind: input, shape index: {}]
  %s1 = inlined_call_operand.vmem [shape: bf16[2,8,128], index: 1, kind: input, shape index: {}]
  %s2 = inlined_call_operand.vmem [shape: bf16[2,64,128], index: 2, kind: input, shape index: {}]
  %s3 = inlined_call_operand.vmem [shape: bf16[2,64,128], index: 3, kind: input, shape index: {}]
  %s4 = inlined_call_operand.vmem [shape: bf16[2,64,128], index: 4, kind: input, shape index: {}]
  %s5 = inlined_call_operand.vmem [shape: f32[2,8,128], index: 5, kind: input, shape index: {}]
  %s6 = inlined_call_operand.vmem [shape: f32[2,8,128], index: 6, kind: input, shape index: {}]
  %s7 = inlined_call_operand.vmem [shape: bf16[3,128,128], index: 7, kind: input, shape index: {}]
  %s8 = inlined_call_operand.vmem [shape: bf16[640,128], index: 8, kind: input, shape index: {}]
  %s9 = inlined_call_operand.vmem [shape: f32[8,128], index: 9, kind: input, shape index: {}]
  %s10 = inlined_call_operand.hbm [shape: f32[2,8,128], index: 10, kind: output, shape index: {}]
  %s11 = sld [smem:[#allocation0]]
  $region73: #{relation_gcn.1} parent=0
    _
  %s13 = ssub.s32 1, %s11
  %s14 = scalar_select 0, %s13, %s11
  $region1: #{relation_gcn.1} parent=0
    #allocation2 [shape = 'u8[8192]{0}', space=vmem, size = 0x2000, scoped, tag = 'output window, operand 0']
    #allocation3 [shape = 's32[2]{0}', space=sflag, size = 0x8, scoped, tag = 'scoped memory for relation_gcn.1']
    %15 = vsyncpa [#allocation3], 0
    %s16 = scalar_lea.sflag [#allocation3], 1
    %17 = vsyncpa %s16, 0
    loop: start=0, step=1, limit=4
    $region2: #{relation_gcn.1} parent=1 // loop_pre_header
      _
    $region3: #{relation_gcn.1} parent=1 // loop_header
      %s19 = sphi 0, %s23
      %p20 = scmp.ge.s32.totalorder %s19, 4
      %s26 = sphi 0, %s38
      %s27 = sphi 0, %s34
      %s28 = sphi 0, %s26
      %s29 = sphi 0, %s27
      %s30 = sphi 0, %s28
      %s31 = sphi 0, %s29
      %s43 = sphi 0, %s45
      %s46 = sphi 0, %s43
      %s47 = sphi 0, %s46
      %s63 = sphi 0, %s47
      %s71 = sphi 0, %s73
      %s74 = sphi 0, %s71
      %s75 = sphi 0, %s74
      %s91 = sphi 0, %s75
      %s99 = sphi 0, %s101
      %s102 = sphi 0, %s99
      %s103 = sphi 0, %s102
      %s119 = sphi 0, %s103
      %s127 = sphi 0, %s129
      %s130 = sphi 0, %s127
      %s131 = sphi 0, %s130
      %s147 = sphi 0, %s131
      %s155 = sphi 0, %s157
      %s158 = sphi 0, %s155
      %s159 = sphi 0, %s158
      %s175 = sphi 0, %s159
      %s181 = sphi 0, %s183
      %s184 = sphi 0, %s181
      %s185 = sphi 0, %s184
      %s201 = sphi 0, %s185
      %s207 = sphi 0, %s209
      %s210 = sphi 0, %s207
      %s211 = sphi 0, %s210
      %s227 = sphi 0, %s211
      %s231 = sphi 0, %s231
      %s233 = sphi 0, %s231
      %s234 = sphi 0, %s233
      %s248 = sphi 0, %s234
      %s252 = sphi 0, %s252
      %s254 = sphi 0, %s252
      %s255 = sphi 0, %s254
      %s269 = sphi 0, %s255
      %s273 = sphi 0, %s273
      %s275 = sphi 0, %s273
      %s276 = sphi 0, %s275
      %s290 = sphi 0, %s276
      %s298 = sphi 0, %s300
      %s301 = sphi 0, %s298
      %s302 = sphi 0, %s301
      %s318 = sphi 0, %s302
    $region4: #{relation_gcn.1} parent=1 // loop_header_branch
      %22 = sbr.rel (%p20) target = $region8
    $region5: #{relation_gcn.1} parent=1 // loop_body
      %s24 = ssub.s32 %s19, 1
      %s25 = ssub.s32 %s19, 2
      %s32 = sadd.s32 1, %s27
      %p33 = scmp.ge.s32.totalorder %s32, 1
      %s34 = scalar_select %p33, 0, %s32
      %s35 = sadd.s32 1, %s26
      %s36 = scalar_select %p33, %s35, %s26
      %p37 = scmp.ge.s32.totalorder %s36, 2
      %s38 = scalar_select %p37, 0, %s36
      %s39 = ssub.s32 %s26, %s38
      %s40 = ssub.s32 %s27, %s34
      %s41 = sor.u32 %s39, %s40
      %p42 = scmp.eq.s32.totalorder %s41, 0
      %s44 = sadd.s32 %s43, 1
      %s45 = scalar_select %p42, %s43, %s44
      %p48 = pneg %p42
      %p49 = scmp.eq.s32.totalorder %s19, 1
      %p50 = por %p48, %p49
      %p51 = scmp.ne.s32.totalorder %s43, %s46
      %p52 = scmp.eq.s32.totalorder %s19, 0
      %p53 = por %p51, %p52
      %p54 = scmp.ne.s32.totalorder %s43, %s46
      %p55 = scmp.eq.s32.totalorder %s24, 1
      %p56 = por %p54, %p55
      %p57 = scmp.ne.s32.totalorder %s46, %s47
      %p58 = scmp.eq.s32.totalorder %s24, 0
      %p59 = por %p57, %p58
      %p60 = scmp.ne.s32.totalorder %s46, %s47
      %p61 = scmp.eq.s32.totalorder %s25, 1
      %p62 = por %p60, %p61
      %p64 = scmp.ne.s32.totalorder %s47, %s63
      %p65 = scmp.eq.s32.totalorder %s25, 0
      %p66 = por %p64, %p65
      %s67 = ssub.s32 %s26, %s38
      %s68 = ssub.s32 %s27, %s34
      %s69 = sor.u32 %s67, %s68
      %p70 = scmp.eq.s32.totalorder %s69, 0
      %s72 = sadd.s32 %s71, 1
      %s73 = scalar_select %p70, %s71, %s72
      %p76 = pneg %p70
      %p77 = scmp.eq.s32.totalorder %s19, 1
      %p78 = por %p76, %p77
      %p79 = scmp.ne.s32.totalorder %s71, %s74
      %p80 = scmp.eq.s32.totalorder %s19, 0
      %p81 = por %p79, %p80
      %p82 = scmp.ne.s32.totalorder %s71, %s74
      %p83 = scmp.eq.s32.totalorder %s24, 1
      %p84 = por %p82, %p83
      %p85 = scmp.ne.s32.totalorder %s74, %s75
      %p86 = scmp.eq.s32.totalorder %s24, 0
      %p87 = por %p85, %p86
      %p88 = scmp.ne.s32.totalorder %s74, %s75
      %p89 = scmp.eq.s32.totalorder %s25, 1
      %p90 = por %p88, %p89
      %p92 = scmp.ne.s32.totalorder %s75, %s91
      %p93 = scmp.eq.s32.totalorder %s25, 0
      %p94 = por %p92, %p93
      %s95 = ssub.s32 %s26, %s38
      %s96 = ssub.s32 %s27, %s34
      %s97 = sor.u32 %s95, %s96
      %p98 = scmp.eq.s32.totalorder %s97, 0
      %s100 = sadd.s32 %s99, 1
      %s101 = scalar_select %p98, %s99, %s100
      %p104 = pneg %p98
      %p105 = scmp.eq.s32.totalorder %s19, 1
      %p106 = por %p104, %p105
      %p107 = scmp.ne.s32.totalorder %s99, %s102
      %p108 = scmp.eq.s32.totalorder %s19, 0
      %p109 = por %p107, %p108
      %p110 = scmp.ne.s32.totalorder %s99, %s102
      %p111 = scmp.eq.s32.totalorder %s24, 1
      %p112 = por %p110, %p111
      %p113 = scmp.ne.s32.totalorder %s102, %s103
      %p114 = scmp.eq.s32.totalorder %s24, 0
      %p115 = por %p113, %p114
      %p116 = scmp.ne.s32.totalorder %s102, %s103
      %p117 = scmp.eq.s32.totalorder %s25, 1
      %p118 = por %p116, %p117
      %p120 = scmp.ne.s32.totalorder %s103, %s119
      %p121 = scmp.eq.s32.totalorder %s25, 0
      %p122 = por %p120, %p121
      %s123 = ssub.s32 %s26, %s38
      %s124 = ssub.s32 %s27, %s34
      %s125 = sor.u32 %s123, %s124
      %p126 = scmp.eq.s32.totalorder %s125, 0
      %s128 = sadd.s32 %s127, 1
      %s129 = scalar_select %p126, %s127, %s128
      %p132 = pneg %p126
      %p133 = scmp.eq.s32.totalorder %s19, 1
      %p134 = por %p132, %p133
      %p135 = scmp.ne.s32.totalorder %s127, %s130
      %p136 = scmp.eq.s32.totalorder %s19, 0
      %p137 = por %p135, %p136
      %p138 = scmp.ne.s32.totalorder %s127, %s130
      %p139 = scmp.eq.s32.totalorder %s24, 1
      %p140 = por %p138, %p139
      %p141 = scmp.ne.s32.totalorder %s130, %s131
      %p142 = scmp.eq.s32.totalorder %s24, 0
      %p143 = por %p141, %p142
      %p144 = scmp.ne.s32.totalorder %s130, %s131
      %p145 = scmp.eq.s32.totalorder %s25, 1
      %p146 = por %p144, %p145
      %p148 = scmp.ne.s32.totalorder %s131, %s147
      %p149 = scmp.eq.s32.totalorder %s25, 0
      %p150 = por %p148, %p149
      %s151 = ssub.s32 %s26, %s38
      %s152 = ssub.s32 %s27, %s34
      %s153 = sor.u32 %s151, %s152
      %p154 = scmp.eq.s32.totalorder %s153, 0
      %s156 = sadd.s32 %s155, 1
      %s157 = scalar_select %p154, %s155, %s156
      %p160 = pneg %p154
      %p161 = scmp.eq.s32.totalorder %s19, 1
      %p162 = por %p160, %p161
      %p163 = scmp.ne.s32.totalorder %s155, %s158
      %p164 = scmp.eq.s32.totalorder %s19, 0
      %p165 = por %p163, %p164
      %p166 = scmp.ne.s32.totalorder %s155, %s158
      %p167 = scmp.eq.s32.totalorder %s24, 1
      %p168 = por %p166, %p167
      %p169 = scmp.ne.s32.totalorder %s158, %s159
      %p170 = scmp.eq.s32.totalorder %s24, 0
      %p171 = por %p169, %p170
      %p172 = scmp.ne.s32.totalorder %s158, %s159
      %p173 = scmp.eq.s32.totalorder %s25, 1
      %p174 = por %p172, %p173
      %p176 = scmp.ne.s32.totalorder %s159, %s175
      %p177 = scmp.eq.s32.totalorder %s25, 0
      %p178 = por %p176, %p177
      %s179 = ssub.s32 %s26, %s38
      %p180 = scmp.eq.s32.totalorder %s179, 0
      %s182 = sadd.s32 %s181, 1
      %s183 = scalar_select %p180, %s181, %s182
      %p186 = pneg %p180
      %p187 = scmp.eq.s32.totalorder %s19, 1
      %p188 = por %p186, %p187
      %p189 = scmp.ne.s32.totalorder %s181, %s184
      %p190 = scmp.eq.s32.totalorder %s19, 0
      %p191 = por %p189, %p190
      %p192 = scmp.ne.s32.totalorder %s181, %s184
      %p193 = scmp.eq.s32.totalorder %s24, 1
      %p194 = por %p192, %p193
      %p195 = scmp.ne.s32.totalorder %s184, %s185
      %p196 = scmp.eq.s32.totalorder %s24, 0
      %p197 = por %p195, %p196
      %p198 = scmp.ne.s32.totalorder %s184, %s185
      %p199 = scmp.eq.s32.totalorder %s25, 1
      %p200 = por %p198, %p199
      %p202 = scmp.ne.s32.totalorder %s185, %s201
      %p203 = scmp.eq.s32.totalorder %s25, 0
      %p204 = por %p202, %p203
      %s205 = ssub.s32 %s26, %s38
      %p206 = scmp.eq.s32.totalorder %s205, 0
      %s208 = sadd.s32 %s207, 1
      %s209 = scalar_select %p206, %s207, %s208
      %p212 = pneg %p206
      %p213 = scmp.eq.s32.totalorder %s19, 1
      %p214 = por %p212, %p213
      %p215 = scmp.ne.s32.totalorder %s207, %s210
      %p216 = scmp.eq.s32.totalorder %s19, 0
      %p217 = por %p215, %p216
      %p218 = scmp.ne.s32.totalorder %s207, %s210
      %p219 = scmp.eq.s32.totalorder %s24, 1
      %p220 = por %p218, %p219
      %p221 = scmp.ne.s32.totalorder %s210, %s211
      %p222 = scmp.eq.s32.totalorder %s24, 0
      %p223 = por %p221, %p222
      %p224 = scmp.ne.s32.totalorder %s210, %s211
      %p225 = scmp.eq.s32.totalorder %s25, 1
      %p226 = por %p224, %p225
      %p228 = scmp.ne.s32.totalorder %s211, %s227
      %p229 = scmp.eq.s32.totalorder %s25, 0
      %p230 = por %p228, %p229
      %s232 = sadd.s32 %s231, 1
      %p235 = scmp.eq.s32.totalorder %s19, 1
      %p236 = scmp.ne.s32.totalorder %s231, %s233
      %p237 = scmp.eq.s32.totalorder %s19, 0
      %p238 = por %p236, %p237
      %p239 = scmp.ne.s32.totalorder %s231, %s233
      %p240 = scmp.eq.s32.totalorder %s24, 1
      %p241 = por %p239, %p240
      %p242 = scmp.ne.s32.totalorder %s233, %s234
      %p243 = scmp.eq.s32.totalorder %s24, 0
      %p244 = por %p242, %p243
      %p245 = scmp.ne.s32.totalorder %s233, %s234
      %p246 = scmp.eq.s32.totalorder %s25, 1
      %p247 = por %p245, %p246
      %p249 = scmp.ne.s32.totalorder %s234, %s248
      %p250 = scmp.eq.s32.totalorder %s25, 0
      %p251 = por %p249, %p250
      %s253 = sadd.s32 %s252, 1
      %p256 = scmp.eq.s32.totalorder %s19, 1
      %p257 = scmp.ne.s32.totalorder %s252, %s254
      %p258 = scmp.eq.s32.totalorder %s19, 0
      %p259 = por %p257, %p258
      %p260 = scmp.ne.s32.totalorder %s252, %s254
      %p261 = scmp.eq.s32.totalorder %s24, 1
      %p262 = por %p260, %p261
      %p263 = scmp.ne.s32.totalorder %s254, %s255
      %p264 = scmp.eq.s32.totalorder %s24, 0
      %p265 = por %p263, %p264
      %p266 = scmp.ne.s32.totalorder %s254, %s255
      %p267 = scmp.eq.s32.totalorder %s25, 1
      %p268 = por %p266, %p267
      %p270 = scmp.ne.s32.totalorder %s255, %s269
      %p271 = scmp.eq.s32.totalorder %s25, 0
      %p272 = por %p270, %p271
      %s274 = sadd.s32 %s273, 1
      %p277 = scmp.eq.s32.totalorder %s19, 1
      %p278 = scmp.ne.s32.totalorder %s273, %s275
      %p279 = scmp.eq.s32.totalorder %s19, 0
      %p280 = por %p278, %p279
      %p281 = scmp.ne.s32.totalorder %s273, %s275
      %p282 = scmp.eq.s32.totalorder %s24, 1
      %p283 = por %p281, %p282
      %p284 = scmp.ne.s32.totalorder %s275, %s276
      %p285 = scmp.eq.s32.totalorder %s24, 0
      %p286 = por %p284, %p285
      %p287 = scmp.ne.s32.totalorder %s275, %s276
      %p288 = scmp.eq.s32.totalorder %s25, 1
      %p289 = por %p287, %p288
      %p291 = scmp.ne.s32.totalorder %s276, %s290
      %p292 = scmp.eq.s32.totalorder %s25, 0
      %p293 = por %p291, %p292
      %s294 = ssub.s32 %s26, %s38
      %s295 = ssub.s32 %s27, %s34
      %s296 = sor.u32 %s294, %s295
      %p297 = scmp.eq.s32.totalorder %s296, 0
      %s299 = sadd.s32 %s298, 1
      %s300 = scalar_select %p297, %s298, %s299
      %p303 = pneg %p297
      %p304 = scmp.eq.s32.totalorder %s19, 1
      %p305 = por %p303, %p304
      %p306 = scmp.ne.s32.totalorder %s298, %s301
      %p307 = scmp.eq.s32.totalorder %s19, 0
      %p308 = por %p306, %p307
      %p309 = scmp.ne.s32.totalorder %s298, %s301
      %p310 = scmp.eq.s32.totalorder %s24, 1
      %p311 = por %p309, %p310
      %p312 = scmp.ne.s32.totalorder %s301, %s302
      %p313 = scmp.eq.s32.totalorder %s24, 0
      %p314 = por %p312, %p313
      %p315 = scmp.ne.s32.totalorder %s301, %s302
      %p316 = scmp.eq.s32.totalorder %s25, 1
      %p317 = por %p315, %p316
      %p319 = scmp.ne.s32.totalorder %s302, %s318
      %p320 = scmp.eq.s32.totalorder %s25, 0
      %p321 = por %p319, %p320
      %p322 = scmp.le.s32.totalorder 1, %s19
      %p323 = scmp.lt.s32.totalorder %s19, 3
      %p324 = pnand %p322, %p323
      %p325 = pneg %p324
      // Predicated region
      $region9: #{relation_gcn.1} parent=5 // pred_check
        _
      $region10: #{relation_gcn.1} parent=5 // pred_check_branch
        %327 = sbr.rel (%p324) target = $region12
      $region11: #{relation_gcn.1} parent=5 // pred_region
        %s328 = ssub.s32 %s19, 1
        // Predicated region
        $region13: #{relation_gcn.1} parent=11 // pred_check
          %p329 = pneg %p244
        $region14: #{relation_gcn.1} parent=11 // pred_check_branch
          %331 = sbr.rel (%p329) target = $region16
        $region15: #{relation_gcn.1} parent=11 // pred_region
          _
        $region16: #{relation_gcn.1} parent=11 // pred_fallthru
          _
        // Predicated region
        $region17: #{relation_gcn.1} parent=11 // pred_check
          %p332 = pneg %p265
        $region18: #{relation_gcn.1} parent=11 // pred_check_branch
          %334 = sbr.rel (%p332) target = $region20
        $region19: #{relation_gcn.1} parent=11 // pred_region
          _
        $region20: #{relation_gcn.1} parent=11 // pred_fallthru
          _
        // Predicated region
        $region21: #{relation_gcn.1} parent=11 // pred_check
          %p335 = pneg %p286
        $region22: #{relation_gcn.1} parent=11 // pred_check_branch
          %337 = sbr.rel (%p335) target = $region24
        $region23: #{relation_gcn.1} parent=11 // pred_region
          _
        $region24: #{relation_gcn.1} parent=11 // pred_fallthru
          _
      $region12: #{relation_gcn.1} parent=5 // pred_fallthru
        _
      %p338 = scmp.lt.s32.totalorder %s19, 2
      // Predicated region
      $region25: #{relation_gcn.1} parent=5 // pred_check
        %p339 = pneg %p338
      $region26: #{relation_gcn.1} parent=5 // pred_check_branch
        %341 = sbr.rel (%p339) target = $region28
      $region27: #{relation_gcn.1} parent=5 // pred_region
        // Predicated region
        $region29: #{relation_gcn.1} parent=27 // pred_check
          %p342 = pneg %p53
        $region30: #{relation_gcn.1} parent=27 // pred_check_branch
          %344 = sbr.rel (%p342) target = $region32
        $region31: #{relation_gcn.1} parent=27 // pred_region
          %p345 = scmp.lt.s32.totalorder %s26, 1
          %s346 = scalar_select %p345, %s26, 1
          %p347 = scmp.lt.s32.totalorder %s27, 0
          %s348 = scalar_select %p347, %s27, 0
          %s349 = sadd.s32 %s348, %s346
          %s350 = smul.addr %s349, 4
          %s351 = scalar_lea.vmem %s0, %s350
        $region32: #{relation_gcn.1} parent=27 // pred_fallthru
          _
        // Predicated region
        $region33: #{relation_gcn.1} parent=27 // pred_check
          %p352 = pneg %p81
        $region34: #{relation_gcn.1} parent=27 // pred_check_branch
          %354 = sbr.rel (%p352) target = $region36
        $region35: #{relation_gcn.1} parent=27 // pred_region
          %p355 = scmp.lt.s32.totalorder %s26, 1
          %s356 = scalar_select %p355, %s26, 1
          %p357 = scmp.lt.s32.totalorder %s27, 0
          %s358 = scalar_select %p357, %s27, 0
          %s359 = sadd.s32 %s358, %s356
          %s360 = smul.addr %s359, 4
          %s361 = scalar_lea.vmem %s1, %s360
        $region36: #{relation_gcn.1} parent=27 // pred_fallthru
          _
        // Predicated region
        $region37: #{relation_gcn.1} parent=27 // pred_check
          %p362 = pneg %p109
        $region38: #{relation_gcn.1} parent=27 // pred_check_branch
          %364 = sbr.rel (%p362) target = $region40
        $region39: #{relation_gcn.1} parent=27 // pred_region
          %s365 = smul.u32 8, %s27
          %p366 = scmp.lt.s32.totalorder %s26, 1
          %s367 = scalar_select %p366, %s26, 1
          %p368 = scmp.lt.s32.totalorder %s365, 7
          %s369 = scalar_select %p368, %s365, 7
          %s370 = smul.addr %s367, 8
          %s371 = sadd.s32 %s369, %s370
          %s372 = smul.addr %s371, 4
          %s373 = scalar_lea.vmem %s2, %s372
          %s374 = smul.u32 8, %s27
        $region40: #{relation_gcn.1} parent=27 // pred_fallthru
          _
        // Predicated region
        $region41: #{relation_gcn.1} parent=27 // pred_check
          %p375 = pneg %p137
        $region42: #{relation_gcn.1} parent=27 // pred_check_branch
          %377 = sbr.rel (%p375) target = $region44
        $region43: #{relation_gcn.1} parent=27 // pred_region
          %s378 = smul.u32 8, %s27
          %p379 = scmp.lt.s32.totalorder %s26, 1
          %s380 = scalar_select %p379, %s26, 1
          %p381 = scmp.lt.s32.totalorder %s378, 7
          %s382 = scalar_select %p381, %s378, 7
          %s383 = smul.addr %s380, 8
          %s384 = sadd.s32 %s382, %s383
          %s385 = smul.addr %s384, 4
          %s386 = scalar_lea.vmem %s3, %s385
          %s387 = smul.u32 8, %s27
        $region44: #{relation_gcn.1} parent=27 // pred_fallthru
          _
        // Predicated region
        $region45: #{relation_gcn.1} parent=27 // pred_check
          %p388 = pneg %p165
        $region46: #{relation_gcn.1} parent=27 // pred_check_branch
          %390 = sbr.rel (%p388) target = $region48
        $region47: #{relation_gcn.1} parent=27 // pred_region
          %s391 = smul.u32 8, %s27
          %p392 = scmp.lt.s32.totalorder %s26, 1
          %s393 = scalar_select %p392, %s26, 1
          %p394 = scmp.lt.s32.totalorder %s391, 7
          %s395 = scalar_select %p394, %s391, 7
          %s396 = smul.addr %s393, 8
          %s397 = sadd.s32 %s395, %s396
          %s398 = smul.addr %s397, 4
          %s399 = scalar_lea.vmem %s4, %s398
          %s400 = smul.u32 8, %s27
        $region48: #{relation_gcn.1} parent=27 // pred_fallthru
          _
        // Predicated region
        $region49: #{relation_gcn.1} parent=27 // pred_check
          %p401 = pneg %p191
        $region50: #{relation_gcn.1} parent=27 // pred_check_branch
          %403 = sbr.rel (%p401) target = $region52
        $region51: #{relation_gcn.1} parent=27 // pred_region
          %p404 = scmp.lt.s32.totalorder %s26, 1
          %s405 = scalar_select %p404, %s26, 1
          %s406 = smul.addr %s405, 8
          %s407 = scalar_lea.vmem %s5, %s406
        $region52: #{relation_gcn.1} parent=27 // pred_fallthru
          _
        // Predicated region
        $region53: #{relation_gcn.1} parent=27 // pred_check
          %p408 = pneg %p217
        $region54: #{relation_gcn.1} parent=27 // pred_check_branch
          %410 = sbr.rel (%p408) target = $region56
        $region55: #{relation_gcn.1} parent=27 // pred_region
          %p411 = scmp.lt.s32.totalorder %s26, 1
          %s412 = scalar_select %p411, %s26, 1
          %s413 = smul.addr %s412, 8
          %s414 = scalar_lea.vmem %s6, %s413
        $region56: #{relation_gcn.1} parent=27 // pred_fallthru
          _
      $region28: #{relation_gcn.1} parent=5 // pred_fallthru
        _
      %p415 = scmp.le.s32.totalorder 1, %s19
      %p416 = scmp.lt.s32.totalorder %s19, 3
      %p417 = pnand %p415, %p416
      %p418 = pneg %p417
      // Predicated region
      $region57: #{relation_gcn.1} parent=5 // pred_check
        _
      $region58: #{relation_gcn.1} parent=5 // pred_check_branch
        %420 = sbr.rel (%p417) target = $region60
      $region59: #{relation_gcn.1} parent=5 // pred_region
        %s421 = ssub.s32 %s19, 1
        %p422 = scmp.lt.s32.totalorder %s28, 1
        %s423 = scalar_select %p422, %s28, 1
        %p424 = scmp.lt.s32.totalorder %s29, 0
        %s425 = scalar_select %p424, %s29, 0
        %s426 = sadd.s32 %s425, %s423
        %s427 = smul.addr %s426, 4
        %s428 = scalar_lea.vmem %s0, %s427
        %p429 = pneg %p59
        %p430 = pneg %p56
        %p431 = scmp.lt.s32.totalorder %s28, 1
        %s432 = scalar_select %p431, %s28, 1
        %p433 = scmp.lt.s32.totalorder %s29, 0
        %s434 = scalar_select %p433, %s29, 0
        %s435 = sadd.s32 %s434, %s432
        %s436 = smul.addr %s435, 4
        %s437 = scalar_lea.vmem %s1, %s436
        %p438 = pneg %p87
        %p439 = pneg %p84
        %s440 = smul.u32 8, %s29
        %p441 = scmp.lt.s32.totalorder %s28, 1
        %s442 = scalar_select %p441, %s28, 1
        %p443 = scmp.lt.s32.totalorder %s440, 7
        %s444 = scalar_select %p443, %s440, 7
        %s445 = smul.addr %s442, 8
        %s446 = sadd.s32 %s444, %s445
        %s447 = smul.addr %s446, 4
        %s448 = scalar_lea.vmem %s2, %s447
        %p449 = pneg %p115
        %p450 = pneg %p112
        %s451 = smul.u32 8, %s29
        %p452 = scmp.lt.s32.totalorder %s28, 1
        %s453 = scalar_select %p452, %s28, 1
        %p454 = scmp.lt.s32.totalorder %s451, 7
        %s455 = scalar_select %p454, %s451, 7
        %s456 = smul.addr %s453, 8
        %s457 = sadd.s32 %s455, %s456
        %s458 = smul.addr %s457, 4
        %s459 = scalar_lea.vmem %s3, %s458
        %p460 = pneg %p143
        %p461 = pneg %p140
        %s462 = smul.u32 8, %s29
        %p463 = scmp.lt.s32.totalorder %s28, 1
        %s464 = scalar_select %p463, %s28, 1
        %p465 = scmp.lt.s32.totalorder %s462, 7
        %s466 = scalar_select %p465, %s462, 7
        %s467 = smul.addr %s464, 8
        %s468 = sadd.s32 %s466, %s467
        %s469 = smul.addr %s468, 4
        %s470 = scalar_lea.vmem %s4, %s469
        %p471 = pneg %p171
        %p472 = pneg %p168
        %p473 = scmp.lt.s32.totalorder %s28, 1
        %s474 = scalar_select %p473, %s28, 1
        %s475 = smul.addr %s474, 8
        %s476 = scalar_lea.vmem %s5, %s475
        %p477 = pneg %p197
        %p478 = pneg %p194
        %p479 = scmp.lt.s32.totalorder %s28, 1
        %s480 = scalar_select %p479, %s28, 1
        %s481 = smul.addr %s480, 8
        %s482 = scalar_lea.vmem %s6, %s481
        %p483 = pneg %p223
        %p484 = pneg %p220
        %p485 = pneg %p244
        %p486 = pneg %p241
        %p487 = pneg %p265
        %p488 = pneg %p262
        %p489 = pneg %p286
        %p490 = pneg %p283
        %p491 = pneg %p314
        %p492 = pneg %p311
        %s493 = sand.u32 %s301, 1
        %s494 = scalar_lea.sflag [#allocation3], %s493
        %s495 = sand.u32 %s301, 1
        %s496 = smul.addr %s495, 8
        %s497 = scalar_lea.vmem [#allocation2], %s496
        %p498 = scmp.lt.s32.totalorder %s28, 1
        %s499 = scalar_select %p498, %s28, 1
        %p500 = scmp.lt.s32.totalorder %s29, 0
        %s501 = scalar_select %p500, %s29, 0
        %s502 = sadd.s32 %s501, %s499
        %s503 = smul.addr %s502, 4
        %s504 = scalar_lea.vmem %s0, %s503
        %p505 = scmp.lt.s32.totalorder %s28, 1
        %s506 = scalar_select %p505, %s28, 1
        %p507 = scmp.lt.s32.totalorder %s29, 0
        %s508 = scalar_select %p507, %s29, 0
        %s509 = sadd.s32 %s508, %s506
        %s510 = smul.addr %s509, 4
        %s511 = scalar_lea.vmem %s1, %s510
        %s512 = smul.u32 8, %s29
        %p513 = scmp.lt.s32.totalorder %s28, 1
        %s514 = scalar_select %p513, %s28, 1
        %p515 = scmp.lt.s32.totalorder %s512, 7
        %s516 = scalar_select %p515, %s512, 7
        %s517 = smul.addr %s514, 8
        %s518 = sadd.s32 %s516, %s517
        %s519 = smul.addr %s518, 4
        %s520 = scalar_lea.vmem %s2, %s519
        %s521 = smul.u32 8, %s29
        %s522 = smul.u32 8, %s29
        %p523 = scmp.lt.s32.totalorder %s28, 1
        %s524 = scalar_select %p523, %s28, 1
        %p525 = scmp.lt.s32.totalorder %s522, 7
        %s526 = scalar_select %p525, %s522, 7
        %s527 = smul.addr %s524, 8
        %s528 = sadd.s32 %s526, %s527
        %s529 = smul.addr %s528, 4
        %s530 = scalar_lea.vmem %s3, %s529
        %s531 = smul.u32 8, %s29
        %s532 = smul.u32 8, %s29
        %p533 = scmp.lt.s32.totalorder %s28, 1
        %s534 = scalar_select %p533, %s28, 1
        %p535 = scmp.lt.s32.totalorder %s532, 7
        %s536 = scalar_select %p535, %s532, 7
        %s537 = smul.addr %s534, 8
        %s538 = sadd.s32 %s536, %s537
        %s539 = smul.addr %s538, 4
        %s540 = scalar_lea.vmem %s4, %s539
        %s541 = smul.u32 8, %s29
        %p542 = scmp.lt.s32.totalorder %s28, 1
        %s543 = scalar_select %p542, %s28, 1
        %s544 = smul.addr %s543, 8
        %s545 = scalar_lea.vmem %s5, %s544
        %p546 = scmp.lt.s32.totalorder %s28, 1
        %s547 = scalar_select %p546, %s28, 1
        %s548 = smul.addr %s547, 8
        %s549 = scalar_lea.vmem %s6, %s548
        %v551 = vld [vmem:[%s520] sm:$0xf]
        %v552 = vld [vmem:[%s520 + $0x4] sm:$0xf]
        %v553 = vld [vmem:[%s520 + $0x8] sm:$0xf]
        %v554 = vld [vmem:[%s520 + $0xc] sm:$0xf]
        %v555 = vld [vmem:[%s520 + $0x10] sm:$0xf]
        %v556 = vld [vmem:[%s520 + $0x14] sm:$0xf]
        %v557 = vld [vmem:[%s520 + $0x18] sm:$0xf]
        %v558 = vld [vmem:[%s520 + $0x1c] sm:$0xf]
        %v559 = vld [vmem:[%s7] sm:$0xf]
        %v560 = vld [vmem:[%s7 + $0x4] sm:$0xf]
        %v561 = vld [vmem:[%s7 + $0x8] sm:$0xf]
        %v562 = vld [vmem:[%s7 + $0xc] sm:$0xf]
        %v563 = vld [vmem:[%s7 + $0x10] sm:$0xf]
        %v564 = vld [vmem:[%s7 + $0x14] sm:$0xf]
        %v565 = vld [vmem:[%s7 + $0x18] sm:$0xf]
        %v566 = vld [vmem:[%s7 + $0x1c] sm:$0xf]
        %v567 = vld [vmem:[%s7 + $0x20] sm:$0xf]
        %v568 = vld [vmem:[%s7 + $0x24] sm:$0xf]
        %v569 = vld [vmem:[%s7 + $0x28] sm:$0xf]
        %v570 = vld [vmem:[%s7 + $0x2c] sm:$0xf]
        %v571 = vld [vmem:[%s7 + $0x30] sm:$0xf]
        %v572 = vld [vmem:[%s7 + $0x34] sm:$0xf]
        %v573 = vld [vmem:[%s7 + $0x38] sm:$0xf]
        %v574 = vld [vmem:[%s7 + $0x3c] sm:$0xf]
        %v575 = vld [vmem:[%s9] sm:$0x1]
        %v576 = vlaneseq
        %v577 = vshrl.u32 %v576, 7
        %v578 = vsub.s32 0, %v577
        %v579 = vrot.slane %v575, %v578
        %v588 = vunpack.c.l.b16 %v551
        %v589 = vunpack.c.l.b16 %v552
        %v590 = vunpack.c.l.b16 %v553
        %v591 = vunpack.c.l.b16 %v554
        %v592 = vunpack.c.l.b16 %v555
        %v593 = vunpack.c.l.b16 %v556
        %v594 = vunpack.c.l.b16 %v557
        %v595 = vunpack.c.l.b16 %v558
        %v596 = vpack.c.b16 %v589, %v588
        %v597 = vpack.c.b16 %v591, %v590
        %v598 = vpack.c.b16 %v593, %v592
        %v599 = vpack.c.b16 %v595, %v594
        %v620 = vunpack.c.l.b16 %v559
        %v621 = vunpack.c.l.b16 %v560
        %v622 = vunpack.c.l.b16 %v561
        %v623 = vunpack.c.l.b16 %v562
        %v624 = vunpack.c.l.b16 %v563
        %v625 = vunpack.c.l.b16 %v564
        %v626 = vunpack.c.l.b16 %v565
        %v627 = vunpack.c.l.b16 %v566
        %v628 = vunpack.c.l.b16 %v567
        %v629 = vunpack.c.l.b16 %v568
        %v630 = vunpack.c.l.b16 %v569
        %v631 = vunpack.c.l.b16 %v570
        %v632 = vunpack.c.l.b16 %v571
        %v633 = vunpack.c.l.b16 %v572
        %v634 = vunpack.c.l.b16 %v573
        %v635 = vunpack.c.l.b16 %v574
        %v636 = vpack.c.b16 %v621, %v620
        %v637 = vpack.c.b16 %v623, %v622
        %v638 = vpack.c.b16 %v625, %v624
        %v639 = vpack.c.b16 %v627, %v626
        %v640 = vpack.c.b16 %v629, %v628
        %v641 = vpack.c.b16 %v631, %v630
        %v642 = vpack.c.b16 %v633, %v632
        %v643 = vpack.c.b16 %v635, %v634
        %652 = vmatprep.subr.bf16.mxu0 0
        %653 = vmatpush1.bf16.msra.mxu0 %v643
        %654 = vmatprep.subr.bf16.mxu0 0
        %655 = vmatpush1.bf16.msra.mxu0 %v642
        %656 = vmatprep.subr.bf16.mxu0 0
        %657 = vmatpush1.bf16.msra.mxu0 %v641
        %658 = vmatprep.subr.bf16.mxu0 0
        %659 = vmatpush1.bf16.msra.mxu0 %v640
        %660 = vmatprep.subr.bf16.mxu0 0
        %661 = vmatpush1.bf16.msra.mxu0 %v639
        %662 = vmatprep.subr.bf16.mxu0 0
        %663 = vmatpush1.bf16.msra.mxu0 %v638
        %664 = vmatprep.subr.bf16.mxu0 0
        %665 = vmatpush1.bf16.msra.mxu0 %v637
        %666 = vmatprep.subr.bf16.mxu0 0
        %667 = vmatpush1.bf16.msra.mxu0 %v636
        %668 = vmatprep.subr.bf16.mxu0 0
        %669 = vmatpush2.bf16.msra.mxu0 0
        %670 = vmatprep.subr.bf16.mxu0 0
        %671 = vmatpush2.bf16.msra.mxu0 0
        %672 = vmatprep.subr.bf16.mxu0 0
        %673 = vmatpush2.bf16.msra.mxu0 0
        %674 = vmatprep.subr.bf16.mxu0 0
        %675 = vmatpush2.bf16.msra.mxu0 0
        %676 = vmatprep.subr.bf16.mxu0 0
        %677 = vmatpush2.bf16.msra.mxu0 0
        %678 = vmatprep.subr.bf16.mxu0 0
        %679 = vmatpush2.bf16.msra.mxu0 0
        %680 = vmatprep.subr.bf16.mxu0 0
        %681 = vmatpush2.bf16.msra.mxu0 0
        %682 = vmatprep.subr.bf16.mxu0 0
        %683 = vmatpush2.bf16.msra.mxu0 0
        %684 = vmatprep.mubr.bf16.mxu0 0
        %685 = vmatmul.mubr.bf16.gmra.mxu0 %v596
        %v686 = vpop.f32.mrf.mxu0
        %v687 = vadd.f32 %v579, %v686
        %v688 = vpop.f32.mrf.mxu0
        %v689 = vpop.f32.mrf.mxu0
        %v690 = vadd.f32 %v579, %v689
        %v691 = vpop.f32.mrf.mxu0
        %692 = vmatprep.mubr.bf16.mxu0 0
        %693 = vmatmul.mubr.bf16.gmra.mxu0 %v597
        %v694 = vpop.f32.mrf.mxu0
        %v695 = vadd.f32 %v579, %v694
        %v696 = vpop.f32.mrf.mxu0
        %v697 = vpop.f32.mrf.mxu0
        %v698 = vadd.f32 %v579, %v697
        %v699 = vpop.f32.mrf.mxu0
        %700 = vmatprep.mubr.bf16.mxu0 0
        %701 = vmatmul.mubr.bf16.gmra.mxu0 %v598
        %v702 = vpop.f32.mrf.mxu0
        %v703 = vadd.f32 %v579, %v702
        %v704 = vpop.f32.mrf.mxu0
        %v705 = vpop.f32.mrf.mxu0
        %v706 = vadd.f32 %v579, %v705
        %v707 = vpop.f32.mrf.mxu0
        %708 = vmatprep.mubr.bf16.mxu0 0
        %709 = vmatmul.mubr.bf16.gmra.mxu0 %v599
        %v710 = vpop.f32.mrf.mxu0
        %v711 = vadd.f32 %v579, %v710
        %v712 = vpop.f32.mrf.mxu0
        %v713 = vpop.f32.mrf.mxu0
        %v714 = vadd.f32 %v579, %v713
        %v715 = vpop.f32.mrf.mxu0
        %716 = vdwg.mxu0
        %v717 = vmax.f32 %v687, 0.0
        %v718 = vmax.f32 %v690, 0.0
        %v719 = vmax.f32 %v695, 0.0
        %v720 = vmax.f32 %v698, 0.0
        %v721 = vmax.f32 %v703, 0.0
        %v722 = vmax.f32 %v706, 0.0
        %v723 = vmax.f32 %v711, 0.0
        %v724 = vmax.f32 %v714, 0.0
        %v725 = vld [vmem:[%s545] sm:$0xff]
        %v726 = vmul.f32 %v717, %v725
        %v727 = vmul.f32 %v718, %v725
        %v728 = vmul.f32 %v719, %v725
        %v729 = vmul.f32 %v720, %v725
        %v730 = vmul.f32 %v721, %v725
        %v731 = vmul.f32 %v722, %v725
        %v732 = vmul.f32 %v723, %v725
        %v733 = vmul.f32 %v724, %v725
        %v734 = vrot.slane %v726, 4
        %v735 = vmax.f32 %v726, %v734
        %v736 = vrot.slane %v735, 2
        %v737 = vmax.f32 %v735, %v736
        %v738 = vrot.slane %v737, 1
        %v739 = vmax.f32 %v737, %v738
        %v740 = vrot.slane %v727, 4
        %v741 = vmax.f32 %v727, %v740
        %v742 = vrot.slane %v741, 2
        %v743 = vmax.f32 %v741, %v742
        %v744 = vrot.slane %v743, 1
        %v745 = vmax.f32 %v743, %v744
        %v746 = vrot.slane %v728, 4
        %v747 = vmax.f32 %v728, %v746
        %v748 = vrot.slane %v747, 2
        %v749 = vmax.f32 %v747, %v748
        %v750 = vrot.slane %v749, 1
        %v751 = vmax.f32 %v749, %v750
        %v752 = vrot.slane %v729, 4
        %v753 = vmax.f32 %v729, %v752
        %v754 = vrot.slane %v753, 2
        %v755 = vmax.f32 %v753, %v754
        %v756 = vrot.slane %v755, 1
        %v757 = vmax.f32 %v755, %v756
        %v758 = vrot.slane %v730, 4
        %v759 = vmax.f32 %v730, %v758
        %v760 = vrot.slane %v759, 2
        %v761 = vmax.f32 %v759, %v760
        %v762 = vrot.slane %v761, 1
        %v763 = vmax.f32 %v761, %v762
        %v764 = vrot.slane %v731, 4
        %v765 = vmax.f32 %v731, %v764
        %v766 = vrot.slane %v765, 2
        %v767 = vmax.f32 %v765, %v766
        %v768 = vrot.slane %v767, 1
        %v769 = vmax.f32 %v767, %v768
        %v770 = vrot.slane %v732, 4
        %v771 = vmax.f32 %v732, %v770
        %v772 = vrot.slane %v771, 2
        %v773 = vmax.f32 %v771, %v772
        %v774 = vrot.slane %v773, 1
        %v775 = vmax.f32 %v773, %v774
        %v776 = vrot.slane %v733, 4
        %v777 = vmax.f32 %v733, %v776
        %v778 = vrot.slane %v777, 2
        %v779 = vmax.f32 %v777, %v778
        %v780 = vrot.slane %v779, 1
        %v781 = vmax.f32 %v779, %v780
        %v782 = vld [vmem:[%s530] sm:$0xf]
        %v783 = vld [vmem:[%s530 + $0x4] sm:$0xf]
        %v784 = vld [vmem:[%s530 + $0x8] sm:$0xf]
        %v785 = vld [vmem:[%s530 + $0xc] sm:$0xf]
        %v786 = vld [vmem:[%s530 + $0x10] sm:$0xf]
        %v787 = vld [vmem:[%s530 + $0x14] sm:$0xf]
        %v788 = vld [vmem:[%s530 + $0x18] sm:$0xf]
        %v789 = vld [vmem:[%s530 + $0x1c] sm:$0xf]
        %s790 = scalar_lea.vmem %s7, 64
        %v791 = vld [vmem:[%s790] sm:$0xf]
        %v792 = vld [vmem:[%s790 + $0x4] sm:$0xf]
        %v793 = vld [vmem:[%s790 + $0x8] sm:$0xf]
        %v794 = vld [vmem:[%s790 + $0xc] sm:$0xf]
        %v795 = vld [vmem:[%s790 + $0x10] sm:$0xf]
        %v796 = vld [vmem:[%s790 + $0x14] sm:$0xf]
        %v797 = vld [vmem:[%s790 + $0x18] sm:$0xf]
        %v798 = vld [vmem:[%s790 + $0x1c] sm:$0xf]
        %v799 = vld [vmem:[%s790 + $0x20] sm:$0xf]
        %v800 = vld [vmem:[%s790 + $0x24] sm:$0xf]
        %v801 = vld [vmem:[%s790 + $0x28] sm:$0xf]
        %v802 = vld [vmem:[%s790 + $0x2c] sm:$0xf]
        %v803 = vld [vmem:[%s790 + $0x30] sm:$0xf]
        %v804 = vld [vmem:[%s790 + $0x34] sm:$0xf]
        %v805 = vld [vmem:[%s790 + $0x38] sm:$0xf]
        %v806 = vld [vmem:[%s790 + $0x3c] sm:$0xf]
        %v807 = vld [vmem:[%s9 + $0x1] sm:$0x1]
        %v808 = vlaneseq
        %v809 = vshrl.u32 %v808, 7
        %v810 = vsub.s32 0, %v809
        %v811 = vrot.slane %v807, %v810
        %v820 = vunpack.c.l.b16 %v782
        %v821 = vunpack.c.l.b16 %v783
        %v822 = vunpack.c.l.b16 %v784
        %v823 = vunpack.c.l.b16 %v785
        %v824 = vunpack.c.l.b16 %v786
        %v825 = vunpack.c.l.b16 %v787
        %v826 = vunpack.c.l.b16 %v788
        %v827 = vunpack.c.l.b16 %v789
        %v828 = vpack.c.b16 %v821, %v820
        %v829 = vpack.c.b16 %v823, %v822
        %v830 = vpack.c.b16 %v825, %v824
        %v831 = vpack.c.b16 %v827, %v826
        %v852 = vunpack.c.l.b16 %v791
        %v853 = vunpack.c.l.b16 %v792
        %v854 = vunpack.c.l.b16 %v793
        %v855 = vunpack.c.l.b16 %v794
        %v856 = vunpack.c.l.b16 %v795
        %v857 = vunpack.c.l.b16 %v796
        %v858 = vunpack.c.l.b16 %v797
        %v859 = vunpack.c.l.b16 %v798
        %v860 = vunpack.c.l.b16 %v799
        %v861 = vunpack.c.l.b16 %v800
        %v862 = vunpack.c.l.b16 %v801
        %v863 = vunpack.c.l.b16 %v802
        %v864 = vunpack.c.l.b16 %v803
        %v865 = vunpack.c.l.b16 %v804
        %v866 = vunpack.c.l.b16 %v805
        %v867 = vunpack.c.l.b16 %v806
        %v868 = vpack.c.b16 %v853, %v852
        %v869 = vpack.c.b16 %v855, %v854
        %v870 = vpack.c.b16 %v857, %v856
        %v871 = vpack.c.b16 %v859, %v858
        %v872 = vpack.c.b16 %v861, %v860
        %v873 = vpack.c.b16 %v863, %v862
        %v874 = vpack.c.b16 %v865, %v864
        %v875 = vpack.c.b16 %v867, %v866
        %884 = vmatprep.subr.bf16.mxu0 0
        %885 = vmatpush1.bf16.msra.mxu0 %v875
        %886 = vmatprep.subr.bf16.mxu0 0
        %887 = vmatpush1.bf16.msra.mxu0 %v874
        %888 = vmatprep.subr.bf16.mxu0 0
        %889 = vmatpush1.bf16.msra.mxu0 %v873
        %890 = vmatprep.subr.bf16.mxu0 0
        %891 = vmatpush1.bf16.msra.mxu0 %v872
        %892 = vmatprep.subr.bf16.mxu0 0
        %893 = vmatpush1.bf16.msra.mxu0 %v871
        %894 = vmatprep.subr.bf16.mxu0 0
        %895 = vmatpush1.bf16.msra.mxu0 %v870
        %896 = vmatprep.subr.bf16.mxu0 0
        %897 = vmatpush1.bf16.msra.mxu0 %v869
        %898 = vmatprep.subr.bf16.mxu0 0
        %899 = vmatpush1.bf16.msra.mxu0 %v868
        %900 = vmatprep.subr.bf16.mxu0 0
        %901 = vmatpush2.bf16.msra.mxu0 0
        %902 = vmatprep.subr.bf16.mxu0 0
        %903 = vmatpush2.bf16.msra.mxu0 0
        %904 = vmatprep.subr.bf16.mxu0 0
        %905 = vmatpush2.bf16.msra.mxu0 0
        %906 = vmatprep.subr.bf16.mxu0 0
        %907 = vmatpush2.bf16.msra.mxu0 0
        %908 = vmatprep.subr.bf16.mxu0 0
        %909 = vmatpush2.bf16.msra.mxu0 0
        %910 = vmatprep.subr.bf16.mxu0 0
        %911 = vmatpush2.bf16.msra.mxu0 0
        %912 = vmatprep.subr.bf16.mxu0 0
        %913 = vmatpush2.bf16.msra.mxu0 0
        %914 = vmatprep.subr.bf16.mxu0 0
        %915 = vmatpush2.bf16.msra.mxu0 0
        %916 = vmatprep.mubr.bf16.mxu0 0
        %917 = vmatmul.mubr.bf16.gmra.mxu0 %v828
        %v918 = vpop.f32.mrf.mxu0
        %v919 = vadd.f32 %v811, %v918
        %v920 = vpop.f32.mrf.mxu0
        %v921 = vpop.f32.mrf.mxu0
        %v922 = vadd.f32 %v811, %v921
        %v923 = vpop.f32.mrf.mxu0
        %924 = vmatprep.mubr.bf16.mxu0 0
        %925 = vmatmul.mubr.bf16.gmra.mxu0 %v829
        %v926 = vpop.f32.mrf.mxu0
        %v927 = vadd.f32 %v811, %v926
        %v928 = vpop.f32.mrf.mxu0
        %v929 = vpop.f32.mrf.mxu0
        %v930 = vadd.f32 %v811, %v929
        %v931 = vpop.f32.mrf.mxu0
        %932 = vmatprep.mubr.bf16.mxu0 0
        %933 = vmatmul.mubr.bf16.gmra.mxu0 %v830
        %v934 = vpop.f32.mrf.mxu0
        %v935 = vadd.f32 %v811, %v934
        %v936 = vpop.f32.mrf.mxu0
        %v937 = vpop.f32.mrf.mxu0
        %v938 = vadd.f32 %v811, %v937
        %v939 = vpop.f32.mrf.mxu0
        %940 = vmatprep.mubr.bf16.mxu0 0
        %941 = vmatmul.mubr.bf16.gmra.mxu0 %v831
        %v942 = vpop.f32.mrf.mxu0
        %v943 = vadd.f32 %v811, %v942
        %v944 = vpop.f32.mrf.mxu0
        %v945 = vpop.f32.mrf.mxu0
        %v946 = vadd.f32 %v811, %v945
        %v947 = vpop.f32.mrf.mxu0
        %948 = vdwg.mxu0
        %v949 = vmax.f32 %v919, 0.0
        %v950 = vmax.f32 %v922, 0.0
        %v951 = vmax.f32 %v927, 0.0
        %v952 = vmax.f32 %v930, 0.0
        %v953 = vmax.f32 %v935, 0.0
        %v954 = vmax.f32 %v938, 0.0
        %v955 = vmax.f32 %v943, 0.0
        %v956 = vmax.f32 %v946, 0.0
        %v957 = vld [vmem:[%s549] sm:$0xff]
        %v958 = vmul.f32 %v949, %v957
        %v959 = vmul.f32 %v950, %v957
        %v960 = vmul.f32 %v951, %v957
        %v961 = vmul.f32 %v952, %v957
        %v962 = vmul.f32 %v953, %v957
        %v963 = vmul.f32 %v954, %v957
        %v964 = vmul.f32 %v955, %v957
        %v965 = vmul.f32 %v956, %v957
        %v966 = vrot.slane %v958, 4
        %v967 = vmax.f32 %v958, %v966
        %v968 = vrot.slane %v967, 2
        %v969 = vmax.f32 %v967, %v968
        %v970 = vrot.slane %v969, 1
        %v971 = vmax.f32 %v969, %v970
        %v972 = vrot.slane %v959, 4
        %v973 = vmax.f32 %v959, %v972
        %v974 = vrot.slane %v973, 2
        %v975 = vmax.f32 %v973, %v974
        %v976 = vrot.slane %v975, 1
        %v977 = vmax.f32 %v975, %v976
        %v978 = vrot.slane %v960, 4
        %v979 = vmax.f32 %v960, %v978
        %v980 = vrot.slane %v979, 2
        %v981 = vmax.f32 %v979, %v980
        %v982 = vrot.slane %v981, 1
        %v983 = vmax.f32 %v981, %v982
        %v984 = vrot.slane %v961, 4
        %v985 = vmax.f32 %v961, %v984
        %v986 = vrot.slane %v985, 2
        %v987 = vmax.f32 %v985, %v986
        %v988 = vrot.slane %v987, 1
        %v989 = vmax.f32 %v987, %v988
        %v990 = vrot.slane %v962, 4
        %v991 = vmax.f32 %v962, %v990
        %v992 = vrot.slane %v991, 2
        %v993 = vmax.f32 %v991, %v992
        %v994 = vrot.slane %v993, 1
        %v995 = vmax.f32 %v993, %v994
        %v996 = vrot.slane %v963, 4
        %v997 = vmax.f32 %v963, %v996
        %v998 = vrot.slane %v997, 2
        %v999 = vmax.f32 %v997, %v998
        %v1000 = vrot.slane %v999, 1
        %v1001 = vmax.f32 %v999, %v1000
        %v1002 = vrot.slane %v964, 4
        %v1003 = vmax.f32 %v964, %v1002
        %v1004 = vrot.slane %v1003, 2
        %v1005 = vmax.f32 %v1003, %v1004
        %v1006 = vrot.slane %v1005, 1
        %v1007 = vmax.f32 %v1005, %v1006
        %v1008 = vrot.slane %v965, 4
        %v1009 = vmax.f32 %v965, %v1008
        %v1010 = vrot.slane %v1009, 2
        %v1011 = vmax.f32 %v1009, %v1010
        %v1012 = vrot.slane %v1011, 1
        %v1013 = vmax.f32 %v1011, %v1012
        %v1014 = vld [vmem:[%s540] sm:$0xf]
        %v1015 = vld [vmem:[%s540 + $0x4] sm:$0xf]
        %v1016 = vld [vmem:[%s540 + $0x8] sm:$0xf]
        %v1017 = vld [vmem:[%s540 + $0xc] sm:$0xf]
        %v1018 = vld [vmem:[%s540 + $0x10] sm:$0xf]
        %v1019 = vld [vmem:[%s540 + $0x14] sm:$0xf]
        %v1020 = vld [vmem:[%s540 + $0x18] sm:$0xf]
        %v1021 = vld [vmem:[%s540 + $0x1c] sm:$0xf]
        %s1022 = scalar_lea.vmem %s7, 128
        %v1023 = vld [vmem:[%s1022] sm:$0xf]
        %v1024 = vld [vmem:[%s1022 + $0x4] sm:$0xf]
        %v1025 = vld [vmem:[%s1022 + $0x8] sm:$0xf]
        %v1026 = vld [vmem:[%s1022 + $0xc] sm:$0xf]
        %v1027 = vld [vmem:[%s1022 + $0x10] sm:$0xf]
        %v1028 = vld [vmem:[%s1022 + $0x14] sm:$0xf]
        %v1029 = vld [vmem:[%s1022 + $0x18] sm:$0xf]
        %v1030 = vld [vmem:[%s1022 + $0x1c] sm:$0xf]
        %v1031 = vld [vmem:[%s1022 + $0x20] sm:$0xf]
        %v1032 = vld [vmem:[%s1022 + $0x24] sm:$0xf]
        %v1033 = vld [vmem:[%s1022 + $0x28] sm:$0xf]
        %v1034 = vld [vmem:[%s1022 + $0x2c] sm:$0xf]
        %v1035 = vld [vmem:[%s1022 + $0x30] sm:$0xf]
        %v1036 = vld [vmem:[%s1022 + $0x34] sm:$0xf]
        %v1037 = vld [vmem:[%s1022 + $0x38] sm:$0xf]
        %v1038 = vld [vmem:[%s1022 + $0x3c] sm:$0xf]
        %v1039 = vld [vmem:[%s9 + $0x2] sm:$0x1]
        %v1040 = vlaneseq
        %v1041 = vshrl.u32 %v1040, 7
        %v1042 = vsub.s32 0, %v1041
        %v1043 = vrot.slane %v1039, %v1042
        %v1052 = vunpack.c.l.b16 %v1014
        %v1053 = vunpack.c.l.b16 %v1015
        %v1054 = vunpack.c.l.b16 %v1016
        %v1055 = vunpack.c.l.b16 %v1017
        %v1056 = vunpack.c.l.b16 %v1018
        %v1057 = vunpack.c.l.b16 %v1019
        %v1058 = vunpack.c.l.b16 %v1020
        %v1059 = vunpack.c.l.b16 %v1021
        %v1060 = vpack.c.b16 %v1053, %v1052
        %v1061 = vpack.c.b16 %v1055, %v1054
        %v1062 = vpack.c.b16 %v1057, %v1056
        %v1063 = vpack.c.b16 %v1059, %v1058
        %v1084 = vunpack.c.l.b16 %v1023
        %v1085 = vunpack.c.l.b16 %v1024
        %v1086 = vunpack.c.l.b16 %v1025
        %v1087 = vunpack.c.l.b16 %v1026
        %v1088 = vunpack.c.l.b16 %v1027
        %v1089 = vunpack.c.l.b16 %v1028
        %v1090 = vunpack.c.l.b16 %v1029
        %v1091 = vunpack.c.l.b16 %v1030
        %v1092 = vunpack.c.l.b16 %v1031
        %v1093 = vunpack.c.l.b16 %v1032
        %v1094 = vunpack.c.l.b16 %v1033
        %v1095 = vunpack.c.l.b16 %v1034
        %v1096 = vunpack.c.l.b16 %v1035
        %v1097 = vunpack.c.l.b16 %v1036
        %v1098 = vunpack.c.l.b16 %v1037
        %v1099 = vunpack.c.l.b16 %v1038
        %v1100 = vpack.c.b16 %v1085, %v1084
        %v1101 = vpack.c.b16 %v1087, %v1086
        %v1102 = vpack.c.b16 %v1089, %v1088
        %v1103 = vpack.c.b16 %v1091, %v1090
        %v1104 = vpack.c.b16 %v1093, %v1092
        %v1105 = vpack.c.b16 %v1095, %v1094
        %v1106 = vpack.c.b16 %v1097, %v1096
        %v1107 = vpack.c.b16 %v1099, %v1098
        %1116 = vmatprep.subr.bf16.mxu0 0
        %1117 = vmatpush1.bf16.msra.mxu0 %v1107
        %1118 = vmatprep.subr.bf16.mxu0 0
        %1119 = vmatpush1.bf16.msra.mxu0 %v1106
        %1120 = vmatprep.subr.bf16.mxu0 0
        %1121 = vmatpush1.bf16.msra.mxu0 %v1105
        %1122 = vmatprep.subr.bf16.mxu0 0
        %1123 = vmatpush1.bf16.msra.mxu0 %v1104
        %1124 = vmatprep.subr.bf16.mxu0 0
        %1125 = vmatpush1.bf16.msra.mxu0 %v1103
        %1126 = vmatprep.subr.bf16.mxu0 0
        %1127 = vmatpush1.bf16.msra.mxu0 %v1102
        %1128 = vmatprep.subr.bf16.mxu0 0
        %1129 = vmatpush1.bf16.msra.mxu0 %v1101
        %1130 = vmatprep.subr.bf16.mxu0 0
        %1131 = vmatpush1.bf16.msra.mxu0 %v1100
        %1132 = vmatprep.subr.bf16.mxu0 0
        %1133 = vmatpush2.bf16.msra.mxu0 0
        %1134 = vmatprep.subr.bf16.mxu0 0
        %1135 = vmatpush2.bf16.msra.mxu0 0
        %1136 = vmatprep.subr.bf16.mxu0 0
        %1137 = vmatpush2.bf16.msra.mxu0 0
        %1138 = vmatprep.subr.bf16.mxu0 0
        %1139 = vmatpush2.bf16.msra.mxu0 0
        %1140 = vmatprep.subr.bf16.mxu0 0
        %1141 = vmatpush2.bf16.msra.mxu0 0
        %1142 = vmatprep.subr.bf16.mxu0 0
        %1143 = vmatpush2.bf16.msra.mxu0 0
        %1144 = vmatprep.subr.bf16.mxu0 0
        %1145 = vmatpush2.bf16.msra.mxu0 0
        %1146 = vmatprep.subr.bf16.mxu0 0
        %1147 = vmatpush2.bf16.msra.mxu0 0
        %1148 = vmatprep.mubr.bf16.mxu0 0
        %1149 = vmatmul.mubr.bf16.gmra.mxu0 %v1060
        %v1150 = vpop.f32.mrf.mxu0
        %v1151 = vadd.f32 %v1043, %v1150
        %v1152 = vpop.f32.mrf.mxu0
        %v1153 = vpop.f32.mrf.mxu0
        %v1154 = vadd.f32 %v1043, %v1153
        %v1155 = vpop.f32.mrf.mxu0
        %1156 = vmatprep.mubr.bf16.mxu0 0
        %1157 = vmatmul.mubr.bf16.gmra.mxu0 %v1061
        %v1158 = vpop.f32.mrf.mxu0
        %v1159 = vadd.f32 %v1043, %v1158
        %v1160 = vpop.f32.mrf.mxu0
        %v1161 = vpop.f32.mrf.mxu0
        %v1162 = vadd.f32 %v1043, %v1161
        %v1163 = vpop.f32.mrf.mxu0
        %1164 = vmatprep.mubr.bf16.mxu0 0
        %1165 = vmatmul.mubr.bf16.gmra.mxu0 %v1062
        %v1166 = vpop.f32.mrf.mxu0
        %v1167 = vadd.f32 %v1043, %v1166
        %v1168 = vpop.f32.mrf.mxu0
        %v1169 = vpop.f32.mrf.mxu0
        %v1170 = vadd.f32 %v1043, %v1169
        %v1171 = vpop.f32.mrf.mxu0
        %1172 = vmatprep.mubr.bf16.mxu0 0
        %1173 = vmatmul.mubr.bf16.gmra.mxu0 %v1063
        %v1174 = vpop.f32.mrf.mxu0
        %v1175 = vadd.f32 %v1043, %v1174
        %v1176 = vpop.f32.mrf.mxu0
        %v1177 = vpop.f32.mrf.mxu0
        %v1178 = vadd.f32 %v1043, %v1177
        %v1179 = vpop.f32.mrf.mxu0
        %1180 = vdwg.mxu0
        %v1181 = vmax.f32 %v1151, 0.0
        %v1182 = vmax.f32 %v1154, 0.0
        %v1183 = vmax.f32 %v1159, 0.0
        %v1184 = vmax.f32 %v1162, 0.0
        %v1185 = vmax.f32 %v1167, 0.0
        %v1186 = vmax.f32 %v1170, 0.0
        %v1187 = vmax.f32 %v1175, 0.0
        %v1188 = vmax.f32 %v1178, 0.0
        %v1189 = vmul.f32 %v1181, %v957
        %v1190 = vmul.f32 %v1182, %v957
        %v1191 = vmul.f32 %v1183, %v957
        %v1192 = vmul.f32 %v1184, %v957
        %v1193 = vmul.f32 %v1185, %v957
        %v1194 = vmul.f32 %v1186, %v957
        %v1195 = vmul.f32 %v1187, %v957
        %v1196 = vmul.f32 %v1188, %v957
        %v1197 = vrot.slane %v1189, 4
        %v1198 = vmax.f32 %v1189, %v1197
        %v1199 = vrot.slane %v1198, 2
        %v1200 = vmax.f32 %v1198, %v1199
        %v1201 = vrot.slane %v1200, 1
        %v1202 = vmax.f32 %v1200, %v1201
        %v1203 = vrot.slane %v1190, 4
        %v1204 = vmax.f32 %v1190, %v1203
        %v1205 = vrot.slane %v1204, 2
        %v1206 = vmax.f32 %v1204, %v1205
        %v1207 = vrot.slane %v1206, 1
        %v1208 = vmax.f32 %v1206, %v1207
        %v1209 = vrot.slane %v1191, 4
        %v1210 = vmax.f32 %v1191, %v1209
        %v1211 = vrot.slane %v1210, 2
        %v1212 = vmax.f32 %v1210, %v1211
        %v1213 = vrot.slane %v1212, 1
        %v1214 = vmax.f32 %v1212, %v1213
        %v1215 = vrot.slane %v1192, 4
        %v1216 = vmax.f32 %v1192, %v1215
        %v1217 = vrot.slane %v1216, 2
        %v1218 = vmax.f32 %v1216, %v1217
        %v1219 = vrot.slane %v1218, 1
        %v1220 = vmax.f32 %v1218, %v1219
        %v1221 = vrot.slane %v1193, 4
        %v1222 = vmax.f32 %v1193, %v1221
        %v1223 = vrot.slane %v1222, 2
        %v1224 = vmax.f32 %v1222, %v1223
        %v1225 = vrot.slane %v1224, 1
        %v1226 = vmax.f32 %v1224, %v1225
        %v1227 = vrot.slane %v1194, 4
        %v1228 = vmax.f32 %v1194, %v1227
        %v1229 = vrot.slane %v1228, 2
        %v1230 = vmax.f32 %v1228, %v1229
        %v1231 = vrot.slane %v1230, 1
        %v1232 = vmax.f32 %v1230, %v1231
        %v1233 = vrot.slane %v1195, 4
        %v1234 = vmax.f32 %v1195, %v1233
        %v1235 = vrot.slane %v1234, 2
        %v1236 = vmax.f32 %v1234, %v1235
        %v1237 = vrot.slane %v1236, 1
        %v1238 = vmax.f32 %v1236, %v1237
        %v1239 = vrot.slane %v1196, 4
        %v1240 = vmax.f32 %v1196, %v1239
        %v1241 = vrot.slane %v1240, 2
        %v1242 = vmax.f32 %v1240, %v1241
        %v1243 = vrot.slane %v1242, 1
        %v1244 = vmax.f32 %v1242, %v1243
        %v1245 = vld [vmem:[%s504] sm:$0xf]
        %v1246 = vld [vmem:[%s8] sm:$0xf]
        %v1247 = vld [vmem:[%s8 + $0x4] sm:$0xf]
        %v1248 = vld [vmem:[%s8 + $0x8] sm:$0xf]
        %v1249 = vld [vmem:[%s8 + $0xc] sm:$0xf]
        %v1250 = vld [vmem:[%s8 + $0x10] sm:$0xf]
        %v1251 = vld [vmem:[%s8 + $0x14] sm:$0xf]
        %v1252 = vld [vmem:[%s8 + $0x18] sm:$0xf]
        %v1253 = vld [vmem:[%s8 + $0x1c] sm:$0xf]
        %v1254 = vld [vmem:[%s8 + $0x20] sm:$0xf]
        %v1255 = vld [vmem:[%s8 + $0x24] sm:$0xf]
        %v1256 = vld [vmem:[%s8 + $0x28] sm:$0xf]
        %v1257 = vld [vmem:[%s8 + $0x2c] sm:$0xf]
        %v1258 = vld [vmem:[%s8 + $0x30] sm:$0xf]
        %v1259 = vld [vmem:[%s8 + $0x34] sm:$0xf]
        %v1260 = vld [vmem:[%s8 + $0x38] sm:$0xf]
        %v1261 = vld [vmem:[%s8 + $0x3c] sm:$0xf]
        %v1262 = vld [vmem:[%s511] sm:$0xf]
        %v1263 = vld [vmem:[%s8 + $0x40] sm:$0xf]
        %v1264 = vld [vmem:[%s8 + $0x44] sm:$0xf]
        %v1265 = vld [vmem:[%s8 + $0x48] sm:$0xf]
        %v1266 = vld [vmem:[%s8 + $0x4c] sm:$0xf]
        %v1267 = vld [vmem:[%s8 + $0x50] sm:$0xf]
        %v1268 = vld [vmem:[%s8 + $0x54] sm:$0xf]
        %v1269 = vld [vmem:[%s8 + $0x58] sm:$0xf]
        %v1270 = vld [vmem:[%s8 + $0x5c] sm:$0xf]
        %v1271 = vld [vmem:[%s8 + $0x60] sm:$0xf]
        %v1272 = vld [vmem:[%s8 + $0x64] sm:$0xf]
        %v1273 = vld [vmem:[%s8 + $0x68] sm:$0xf]
        %v1274 = vld [vmem:[%s8 + $0x6c] sm:$0xf]
        %v1275 = vld [vmem:[%s8 + $0x70] sm:$0xf]
        %v1276 = vld [vmem:[%s8 + $0x74] sm:$0xf]
        %v1277 = vld [vmem:[%s8 + $0x78] sm:$0xf]
        %v1278 = vld [vmem:[%s8 + $0x7c] sm:$0xf]
        %v1295 = vunpack.c.l.b16 %v1263
        %v1296 = vunpack.c.l.b16 %v1264
        %v1297 = vunpack.c.l.b16 %v1265
        %v1298 = vunpack.c.l.b16 %v1266
        %v1299 = vunpack.c.l.b16 %v1267
        %v1300 = vunpack.c.l.b16 %v1268
        %v1301 = vunpack.c.l.b16 %v1269
        %v1302 = vunpack.c.l.b16 %v1270
        %v1303 = vunpack.c.l.b16 %v1271
        %v1304 = vunpack.c.l.b16 %v1272
        %v1305 = vunpack.c.l.b16 %v1273
        %v1306 = vunpack.c.l.b16 %v1274
        %v1307 = vunpack.c.l.b16 %v1275
        %v1308 = vunpack.c.l.b16 %v1276
        %v1309 = vunpack.c.l.b16 %v1277
        %v1310 = vunpack.c.l.b16 %v1278
        %v1311 = vpack.c.b16 %v1296, %v1295
        %v1312 = vpack.c.b16 %v1298, %v1297
        %v1313 = vpack.c.b16 %v1300, %v1299
        %v1314 = vpack.c.b16 %v1302, %v1301
        %v1315 = vpack.c.b16 %v1304, %v1303
        %v1316 = vpack.c.b16 %v1306, %v1305
        %v1317 = vpack.c.b16 %v1308, %v1307
        %v1318 = vpack.c.b16 %v1310, %v1309
        %1327 = vmatprep.subr.bf16.mxu0 0
        %1328 = vmatpush1.bf16.msra.mxu0 %v1318
        %1329 = vmatprep.subr.bf16.mxu0 0
        %1330 = vmatpush1.bf16.msra.mxu0 %v1317
        %1331 = vmatprep.subr.bf16.mxu0 0
        %1332 = vmatpush1.bf16.msra.mxu0 %v1316
        %1333 = vmatprep.subr.bf16.mxu0 0
        %1334 = vmatpush1.bf16.msra.mxu0 %v1315
        %1335 = vmatprep.subr.bf16.mxu0 0
        %1336 = vmatpush1.bf16.msra.mxu0 %v1314
        %1337 = vmatprep.subr.bf16.mxu0 0
        %1338 = vmatpush1.bf16.msra.mxu0 %v1313
        %1339 = vmatprep.subr.bf16.mxu0 0
        %1340 = vmatpush1.bf16.msra.mxu0 %v1312
        %1341 = vmatprep.subr.bf16.mxu0 0
        %1342 = vmatpush1.bf16.msra.mxu0 %v1311
        %1343 = vmatprep.subr.bf16.mxu0 0
        %1344 = vmatpush2.bf16.msra.mxu0 0
        %1345 = vmatprep.subr.bf16.mxu0 0
        %1346 = vmatpush2.bf16.msra.mxu0 0
        %1347 = vmatprep.subr.bf16.mxu0 0
        %1348 = vmatpush2.bf16.msra.mxu0 0
        %1349 = vmatprep.subr.bf16.mxu0 0
        %1350 = vmatpush2.bf16.msra.mxu0 0
        %1351 = vmatprep.subr.bf16.mxu0 0
        %1352 = vmatpush2.bf16.msra.mxu0 0
        %1353 = vmatprep.subr.bf16.mxu0 0
        %1354 = vmatpush2.bf16.msra.mxu0 0
        %1355 = vmatprep.subr.bf16.mxu0 0
        %1356 = vmatpush2.bf16.msra.mxu0 0
        %1357 = vmatprep.subr.bf16.mxu0 0
        %1358 = vmatpush2.bf16.msra.mxu0 0
        %1359 = vmatprep.mubr.bf16.mxu0 0
        %1360 = vmatmul.mubr.bf16.gmra.mxu0 %v1262
        %v1361 = vpop.f32.mrf.mxu0
        %v1362 = vadd.f32 0.0, %v1361
        %v1363 = vpop.f32.mrf.mxu0
        %v1364 = vpop.f32.mrf.mxu0
        %v1365 = vpop.f32.mrf.mxu0
        %1366 = vdwg.mxu0
        %v1383 = vunpack.c.l.b16 %v1246
        %v1384 = vunpack.c.l.b16 %v1247
        %v1385 = vunpack.c.l.b16 %v1248
        %v1386 = vunpack.c.l.b16 %v1249
        %v1387 = vunpack.c.l.b16 %v1250
        %v1388 = vunpack.c.l.b16 %v1251
        %v1389 = vunpack.c.l.b16 %v1252
        %v1390 = vunpack.c.l.b16 %v1253
        %v1391 = vunpack.c.l.b16 %v1254
        %v1392 = vunpack.c.l.b16 %v1255
        %v1393 = vunpack.c.l.b16 %v1256
        %v1394 = vunpack.c.l.b16 %v1257
        %v1395 = vunpack.c.l.b16 %v1258
        %v1396 = vunpack.c.l.b16 %v1259
        %v1397 = vunpack.c.l.b16 %v1260
        %v1398 = vunpack.c.l.b16 %v1261
        %v1399 = vpack.c.b16 %v1384, %v1383
        %v1400 = vpack.c.b16 %v1386, %v1385
        %v1401 = vpack.c.b16 %v1388, %v1387
        %v1402 = vpack.c.b16 %v1390, %v1389
        %v1403 = vpack.c.b16 %v1392, %v1391
        %v1404 = vpack.c.b16 %v1394, %v1393
        %v1405 = vpack.c.b16 %v1396, %v1395
        %v1406 = vpack.c.b16 %v1398, %v1397
        %1415 = vmatprep.subr.bf16.mxu0 0
        %1416 = vmatpush1.bf16.msra.mxu0 %v1406
        %1417 = vmatprep.subr.bf16.mxu0 0
        %1418 = vmatpush1.bf16.msra.mxu0 %v1405
        %1419 = vmatprep.subr.bf16.mxu0 0
        %1420 = vmatpush1.bf16.msra.mxu0 %v1404
        %1421 = vmatprep.subr.bf16.mxu0 0
        %1422 = vmatpush1.bf16.msra.mxu0 %v1403
        %1423 = vmatprep.subr.bf16.mxu0 0
        %1424 = vmatpush1.bf16.msra.mxu0 %v1402
        %1425 = vmatprep.subr.bf16.mxu0 0
        %1426 = vmatpush1.bf16.msra.mxu0 %v1401
        %1427 = vmatprep.subr.bf16.mxu0 0
        %1428 = vmatpush1.bf16.msra.mxu0 %v1400
        %1429 = vmatprep.subr.bf16.mxu0 0
        %1430 = vmatpush1.bf16.msra.mxu0 %v1399
        %1431 = vmatprep.subr.bf16.mxu0 0
        %1432 = vmatpush2.bf16.msra.mxu0 0
        %1433 = vmatprep.subr.bf16.mxu0 0
        %1434 = vmatpush2.bf16.msra.mxu0 0
        %1435 = vmatprep.subr.bf16.mxu0 0
        %1436 = vmatpush2.bf16.msra.mxu0 0
        %1437 = vmatprep.subr.bf16.mxu0 0
        %1438 = vmatpush2.bf16.msra.mxu0 0
        %1439 = vmatprep.subr.bf16.mxu0 0
        %1440 = vmatpush2.bf16.msra.mxu0 0
        %1441 = vmatprep.subr.bf16.mxu0 0
        %1442 = vmatpush2.bf16.msra.mxu0 0
        %1443 = vmatprep.subr.bf16.mxu0 0
        %1444 = vmatpush2.bf16.msra.mxu0 0
        %1445 = vmatprep.subr.bf16.mxu0 0
        %1446 = vmatpush2.bf16.msra.mxu0 0
        %1447 = vmatprep.mubr.bf16.mxu0 0
        %1448 = vmatmul.mubr.bf16.gmra.mxu0 %v1245
        %v1449 = vpop.f32.mrf.mxu0
        %v1450 = vadd.f32 %v1362, %v1449
        %v1451 = vpop.f32.mrf.mxu0
        %v1452 = vpop.f32.mrf.mxu0
        %v1453 = vpop.f32.mrf.mxu0
        %1454 = vdwg.mxu0
        %v1455 = vpack.c.bf16 %v739, %v739
        %v1456 = vpack.c.bf16 %v745, %v745
        %v1457 = vpack.c.bf16 %v751, %v751
        %v1458 = vpack.c.bf16 %v757, %v757
        %v1459 = vpack.c.bf16 %v763, %v763
        %v1460 = vpack.c.bf16 %v769, %v769
        %v1461 = vpack.c.bf16 %v775, %v775
        %v1462 = vpack.c.bf16 %v781, %v781
        %v1463 = vld [vmem:[%s8 + $0x80] sm:$0xf]
        %v1464 = vld [vmem:[%s8 + $0x84] sm:$0xf]
        %v1465 = vld [vmem:[%s8 + $0x88] sm:$0xf]
        %v1466 = vld [vmem:[%s8 + $0x8c] sm:$0xf]
        %v1467 = vld [vmem:[%s8 + $0x90] sm:$0xf]
        %v1468 = vld [vmem:[%s8 + $0x94] sm:$0xf]
        %v1469 = vld [vmem:[%s8 + $0x98] sm:$0xf]
        %v1470 = vld [vmem:[%s8 + $0x9c] sm:$0xf]
        %v1471 = vld [vmem:[%s8 + $0xa0] sm:$0xf]
        %v1472 = vld [vmem:[%s8 + $0xa4] sm:$0xf]
        %v1473 = vld [vmem:[%s8 + $0xa8] sm:$0xf]
        %v1474 = vld [vmem:[%s8 + $0xac] sm:$0xf]
        %v1475 = vld [vmem:[%s8 + $0xb0] sm:$0xf]
        %v1476 = vld [vmem:[%s8 + $0xb4] sm:$0xf]
        %v1477 = vld [vmem:[%s8 + $0xb8] sm:$0xf]
        %v1478 = vld [vmem:[%s8 + $0xbc] sm:$0xf]
        %v1487 = vunpack.c.l.b16 %v1455
        %v1488 = vunpack.c.l.b16 %v1456
        %v1489 = vunpack.c.l.b16 %v1457
        %v1490 = vunpack.c.l.b16 %v1458
        %v1491 = vunpack.c.l.b16 %v1459
        %v1492 = vunpack.c.l.b16 %v1460
        %v1493 = vunpack.c.l.b16 %v1461
        %v1494 = vunpack.c.l.b16 %v1462
        %vm1495 = vcmask 1041409
        %v1496 = vsel %vm1495, %v1488, %v1487
        %vm1497 = vcmask 1042434
        %v1498 = vsel %vm1497, %v1489, %v1496
        %vm1499 = vcmask 1043459
        %v1500 = vsel %vm1499, %v1490, %v1498
        %vm1501 = vcmask 1044484
        %v1502 = vsel %vm1501, %v1491, %v1500
        %vm1503 = vcmask 1045509
        %v1504 = vsel %vm1503, %v1492, %v1502
        %vm1505 = vcmask 1046534
        %v1506 = vsel %vm1505, %v1493, %v1504
        %vm1507 = vcmask 1047559
        %v1508 = vsel %vm1507, %v1494, %v1506
        %v1509 = vpack.c.b16 %v1508, %v1508
        %v1527 = vunpack.c.l.b16 %v1463
        %v1528 = vunpack.c.l.b16 %v1464
        %v1529 = vunpack.c.l.b16 %v1465
        %v1530 = vunpack.c.l.b16 %v1466
        %v1531 = vunpack.c.l.b16 %v1467
        %v1532 = vunpack.c.l.b16 %v1468
        %v1533 = vunpack.c.l.b16 %v1469
        %v1534 = vunpack.c.l.b16 %v1470
        %v1535 = vunpack.c.l.b16 %v1471
        %v1536 = vunpack.c.l.b16 %v1472
        %v1537 = vunpack.c.l.b16 %v1473
        %v1538 = vunpack.c.l.b16 %v1474
        %v1539 = vunpack.c.l.b16 %v1475
        %v1540 = vunpack.c.l.b16 %v1476
        %v1541 = vunpack.c.l.b16 %v1477
        %v1542 = vunpack.c.l.b16 %v1478
        %v1543 = vpack.c.b16 %v1528, %v1527
        %v1544 = vpack.c.b16 %v1530, %v1529
        %v1545 = vpack.c.b16 %v1532, %v1531
        %v1546 = vpack.c.b16 %v1534, %v1533
        %v1547 = vpack.c.b16 %v1536, %v1535
        %v1548 = vpack.c.b16 %v1538, %v1537
        %v1549 = vpack.c.b16 %v1540, %v1539
        %v1550 = vpack.c.b16 %v1542, %v1541
        %1559 = vmatprep.subr.bf16.mxu0 0
        %1560 = vmatpush1.bf16.msra.mxu0 %v1550
        %1561 = vmatprep.subr.bf16.mxu0 0
        %1562 = vmatpush1.bf16.msra.mxu0 %v1549
        %1563 = vmatprep.subr.bf16.mxu0 0
        %1564 = vmatpush1.bf16.msra.mxu0 %v1548
        %1565 = vmatprep.subr.bf16.mxu0 0
        %1566 = vmatpush1.bf16.msra.mxu0 %v1547
        %1567 = vmatprep.subr.bf16.mxu0 0
        %1568 = vmatpush1.bf16.msra.mxu0 %v1546
        %1569 = vmatprep.subr.bf16.mxu0 0
        %1570 = vmatpush1.bf16.msra.mxu0 %v1545
        %1571 = vmatprep.subr.bf16.mxu0 0
        %1572 = vmatpush1.bf16.msra.mxu0 %v1544
        %1573 = vmatprep.subr.bf16.mxu0 0
        %1574 = vmatpush1.bf16.msra.mxu0 %v1543
        %1575 = vmatprep.subr.bf16.mxu0 0
        %1576 = vmatpush2.bf16.msra.mxu0 0
        %1577 = vmatprep.subr.bf16.mxu0 0
        %1578 = vmatpush2.bf16.msra.mxu0 0
        %1579 = vmatprep.subr.bf16.mxu0 0
        %1580 = vmatpush2.bf16.msra.mxu0 0
        %1581 = vmatprep.subr.bf16.mxu0 0
        %1582 = vmatpush2.bf16.msra.mxu0 0
        %1583 = vmatprep.subr.bf16.mxu0 0
        %1584 = vmatpush2.bf16.msra.mxu0 0
        %1585 = vmatprep.subr.bf16.mxu0 0
        %1586 = vmatpush2.bf16.msra.mxu0 0
        %1587 = vmatprep.subr.bf16.mxu0 0
        %1588 = vmatpush2.bf16.msra.mxu0 0
        %1589 = vmatprep.subr.bf16.mxu0 0
        %1590 = vmatpush2.bf16.msra.mxu0 0
        %1591 = vmatprep.mubr.bf16.mxu0 0
        %1592 = vmatmul.mubr.bf16.gmra.mxu0 %v1509
        %v1593 = vpop.f32.mrf.mxu0
        %v1594 = vadd.f32 0.0, %v1593
        %v1595 = vpop.f32.mrf.mxu0
        %v1596 = vpop.f32.mrf.mxu0
        %v1597 = vpop.f32.mrf.mxu0
        %1598 = vdwg.mxu0
        %v1599 = vadd.f32 %v1450, %v1594
        %v1600 = vpack.c.bf16 %v971, %v971
        %v1601 = vpack.c.bf16 %v977, %v977
        %v1602 = vpack.c.bf16 %v983, %v983
        %v1603 = vpack.c.bf16 %v989, %v989
        %v1604 = vpack.c.bf16 %v995, %v995
        %v1605 = vpack.c.bf16 %v1001, %v1001
        %v1606 = vpack.c.bf16 %v1007, %v1007
        %v1607 = vpack.c.bf16 %v1013, %v1013
        %v1608 = vld [vmem:[%s8 + $0xc0] sm:$0xf]
        %v1609 = vld [vmem:[%s8 + $0xc4] sm:$0xf]
        %v1610 = vld [vmem:[%s8 + $0xc8] sm:$0xf]
        %v1611 = vld [vmem:[%s8 + $0xcc] sm:$0xf]
        %v1612 = vld [vmem:[%s8 + $0xd0] sm:$0xf]
        %v1613 = vld [vmem:[%s8 + $0xd4] sm:$0xf]
        %v1614 = vld [vmem:[%s8 + $0xd8] sm:$0xf]
        %v1615 = vld [vmem:[%s8 + $0xdc] sm:$0xf]
        %v1616 = vld [vmem:[%s8 + $0xe0] sm:$0xf]
        %v1617 = vld [vmem:[%s8 + $0xe4] sm:$0xf]
        %v1618 = vld [vmem:[%s8 + $0xe8] sm:$0xf]
        %v1619 = vld [vmem:[%s8 + $0xec] sm:$0xf]
        %v1620 = vld [vmem:[%s8 + $0xf0] sm:$0xf]
        %v1621 = vld [vmem:[%s8 + $0xf4] sm:$0xf]
        %v1622 = vld [vmem:[%s8 + $0xf8] sm:$0xf]
        %v1623 = vld [vmem:[%s8 + $0xfc] sm:$0xf]
        %v1632 = vunpack.c.l.b16 %v1600
        %v1633 = vunpack.c.l.b16 %v1601
        %v1634 = vunpack.c.l.b16 %v1602
        %v1635 = vunpack.c.l.b16 %v1603
        %v1636 = vunpack.c.l.b16 %v1604
        %v1637 = vunpack.c.l.b16 %v1605
        %v1638 = vunpack.c.l.b16 %v1606
        %v1639 = vunpack.c.l.b16 %v1607
        %v1640 = vsel %vm1495, %v1633, %v1632
        %v1641 = vsel %vm1497, %v1634, %v1640
        %v1642 = vsel %vm1499, %v1635, %v1641
        %v1643 = vsel %vm1501, %v1636, %v1642
        %v1644 = vsel %vm1503, %v1637, %v1643
        %v1645 = vsel %vm1505, %v1638, %v1644
        %v1646 = vsel %vm1507, %v1639, %v1645
        %v1647 = vpack.c.b16 %v1646, %v1646
        %v1665 = vunpack.c.l.b16 %v1608
        %v1666 = vunpack.c.l.b16 %v1609
        %v1667 = vunpack.c.l.b16 %v1610
        %v1668 = vunpack.c.l.b16 %v1611
        %v1669 = vunpack.c.l.b16 %v1612
        %v1670 = vunpack.c.l.b16 %v1613
        %v1671 = vunpack.c.l.b16 %v1614
        %v1672 = vunpack.c.l.b16 %v1615
        %v1673 = vunpack.c.l.b16 %v1616
        %v1674 = vunpack.c.l.b16 %v1617
        %v1675 = vunpack.c.l.b16 %v1618
        %v1676 = vunpack.c.l.b16 %v1619
        %v1677 = vunpack.c.l.b16 %v1620
        %v1678 = vunpack.c.l.b16 %v1621
        %v1679 = vunpack.c.l.b16 %v1622
        %v1680 = vunpack.c.l.b16 %v1623
        %v1681 = vpack.c.b16 %v1666, %v1665
        %v1682 = vpack.c.b16 %v1668, %v1667
        %v1683 = vpack.c.b16 %v1670, %v1669
        %v1684 = vpack.c.b16 %v1672, %v1671
        %v1685 = vpack.c.b16 %v1674, %v1673
        %v1686 = vpack.c.b16 %v1676, %v1675
        %v1687 = vpack.c.b16 %v1678, %v1677
        %v1688 = vpack.c.b16 %v1680, %v1679
        %1697 = vmatprep.subr.bf16.mxu0 0
        %1698 = vmatpush1.bf16.msra.mxu0 %v1688
        %1699 = vmatprep.subr.bf16.mxu0 0
        %1700 = vmatpush1.bf16.msra.mxu0 %v1687
        %1701 = vmatprep.subr.bf16.mxu0 0
        %1702 = vmatpush1.bf16.msra.mxu0 %v1686
        %1703 = vmatprep.subr.bf16.mxu0 0
        %1704 = vmatpush1.bf16.msra.mxu0 %v1685
        %1705 = vmatprep.subr.bf16.mxu0 0
        %1706 = vmatpush1.bf16.msra.mxu0 %v1684
        %1707 = vmatprep.subr.bf16.mxu0 0
        %1708 = vmatpush1.bf16.msra.mxu0 %v1683
        %1709 = vmatprep.subr.bf16.mxu0 0
        %1710 = vmatpush1.bf16.msra.mxu0 %v1682
        %1711 = vmatprep.subr.bf16.mxu0 0
        %1712 = vmatpush1.bf16.msra.mxu0 %v1681
        %1713 = vmatprep.subr.bf16.mxu0 0
        %1714 = vmatpush2.bf16.msra.mxu0 0
        %1715 = vmatprep.subr.bf16.mxu0 0
        %1716 = vmatpush2.bf16.msra.mxu0 0
        %1717 = vmatprep.subr.bf16.mxu0 0
        %1718 = vmatpush2.bf16.msra.mxu0 0
        %1719 = vmatprep.subr.bf16.mxu0 0
        %1720 = vmatpush2.bf16.msra.mxu0 0
        %1721 = vmatprep.subr.bf16.mxu0 0
        %1722 = vmatpush2.bf16.msra.mxu0 0
        %1723 = vmatprep.subr.bf16.mxu0 0
        %1724 = vmatpush2.bf16.msra.mxu0 0
        %1725 = vmatprep.subr.bf16.mxu0 0
        %1726 = vmatpush2.bf16.msra.mxu0 0
        %1727 = vmatprep.subr.bf16.mxu0 0
        %1728 = vmatpush2.bf16.msra.mxu0 0
        %1729 = vmatprep.mubr.bf16.mxu0 0
        %1730 = vmatmul.mubr.bf16.gmra.mxu0 %v1647
        %v1731 = vpop.f32.mrf.mxu0
        %v1732 = vadd.f32 0.0, %v1731
        %v1733 = vpop.f32.mrf.mxu0
        %v1734 = vpop.f32.mrf.mxu0
        %v1735 = vpop.f32.mrf.mxu0
        %1736 = vdwg.mxu0
        %v1737 = vadd.f32 %v1599, %v1732
        %v1738 = vpack.c.bf16 %v1202, %v1202
        %v1739 = vpack.c.bf16 %v1208, %v1208
        %v1740 = vpack.c.bf16 %v1214, %v1214
        %v1741 = vpack.c.bf16 %v1220, %v1220
        %v1742 = vpack.c.bf16 %v1226, %v1226
        %v1743 = vpack.c.bf16 %v1232, %v1232
        %v1744 = vpack.c.bf16 %v1238, %v1238
        %v1745 = vpack.c.bf16 %v1244, %v1244
        %v1746 = vld [vmem:[%s8 + $0x100] sm:$0xf]
        %v1747 = vld [vmem:[%s8 + $0x104] sm:$0xf]
        %v1748 = vld [vmem:[%s8 + $0x108] sm:$0xf]
        %v1749 = vld [vmem:[%s8 + $0x10c] sm:$0xf]
        %v1750 = vld [vmem:[%s8 + $0x110] sm:$0xf]
        %v1751 = vld [vmem:[%s8 + $0x114] sm:$0xf]
        %v1752 = vld [vmem:[%s8 + $0x118] sm:$0xf]
        %v1753 = vld [vmem:[%s8 + $0x11c] sm:$0xf]
        %v1754 = vld [vmem:[%s8 + $0x120] sm:$0xf]
        %v1755 = vld [vmem:[%s8 + $0x124] sm:$0xf]
        %v1756 = vld [vmem:[%s8 + $0x128] sm:$0xf]
        %v1757 = vld [vmem:[%s8 + $0x12c] sm:$0xf]
        %v1758 = vld [vmem:[%s8 + $0x130] sm:$0xf]
        %v1759 = vld [vmem:[%s8 + $0x134] sm:$0xf]
        %v1760 = vld [vmem:[%s8 + $0x138] sm:$0xf]
        %v1761 = vld [vmem:[%s8 + $0x13c] sm:$0xf]
        %v1770 = vunpack.c.l.b16 %v1738
        %v1771 = vunpack.c.l.b16 %v1739
        %v1772 = vunpack.c.l.b16 %v1740
        %v1773 = vunpack.c.l.b16 %v1741
        %v1774 = vunpack.c.l.b16 %v1742
        %v1775 = vunpack.c.l.b16 %v1743
        %v1776 = vunpack.c.l.b16 %v1744
        %v1777 = vunpack.c.l.b16 %v1745
        %v1778 = vsel %vm1495, %v1771, %v1770
        %v1779 = vsel %vm1497, %v1772, %v1778
        %v1780 = vsel %vm1499, %v1773, %v1779
        %v1781 = vsel %vm1501, %v1774, %v1780
        %v1782 = vsel %vm1503, %v1775, %v1781
        %v1783 = vsel %vm1505, %v1776, %v1782
        %v1784 = vsel %vm1507, %v1777, %v1783
        %v1785 = vpack.c.b16 %v1784, %v1784
        %v1803 = vunpack.c.l.b16 %v1746
        %v1804 = vunpack.c.l.b16 %v1747
        %v1805 = vunpack.c.l.b16 %v1748
        %v1806 = vunpack.c.l.b16 %v1749
        %v1807 = vunpack.c.l.b16 %v1750
        %v1808 = vunpack.c.l.b16 %v1751
        %v1809 = vunpack.c.l.b16 %v1752
        %v1810 = vunpack.c.l.b16 %v1753
        %v1811 = vunpack.c.l.b16 %v1754
        %v1812 = vunpack.c.l.b16 %v1755
        %v1813 = vunpack.c.l.b16 %v1756
        %v1814 = vunpack.c.l.b16 %v1757
        %v1815 = vunpack.c.l.b16 %v1758
        %v1816 = vunpack.c.l.b16 %v1759
        %v1817 = vunpack.c.l.b16 %v1760
        %v1818 = vunpack.c.l.b16 %v1761
        %v1819 = vpack.c.b16 %v1804, %v1803
        %v1820 = vpack.c.b16 %v1806, %v1805
        %v1821 = vpack.c.b16 %v1808, %v1807
        %v1822 = vpack.c.b16 %v1810, %v1809
        %v1823 = vpack.c.b16 %v1812, %v1811
        %v1824 = vpack.c.b16 %v1814, %v1813
        %v1825 = vpack.c.b16 %v1816, %v1815
        %v1826 = vpack.c.b16 %v1818, %v1817
        %1835 = vmatprep.subr.bf16.mxu0 0
        %1836 = vmatpush1.bf16.msra.mxu0 %v1826
        %1837 = vmatprep.subr.bf16.mxu0 0
        %1838 = vmatpush1.bf16.msra.mxu0 %v1825
        %1839 = vmatprep.subr.bf16.mxu0 0
        %1840 = vmatpush1.bf16.msra.mxu0 %v1824
        %1841 = vmatprep.subr.bf16.mxu0 0
        %1842 = vmatpush1.bf16.msra.mxu0 %v1823
        %1843 = vmatprep.subr.bf16.mxu0 0
        %1844 = vmatpush1.bf16.msra.mxu0 %v1822
        %1845 = vmatprep.subr.bf16.mxu0 0
        %1846 = vmatpush1.bf16.msra.mxu0 %v1821
        %1847 = vmatprep.subr.bf16.mxu0 0
        %1848 = vmatpush1.bf16.msra.mxu0 %v1820
        %1849 = vmatprep.subr.bf16.mxu0 0
        %1850 = vmatpush1.bf16.msra.mxu0 %v1819
        %1851 = vmatprep.subr.bf16.mxu0 0
        %1852 = vmatpush2.bf16.msra.mxu0 0
        %1853 = vmatprep.subr.bf16.mxu0 0
        %1854 = vmatpush2.bf16.msra.mxu0 0
        %1855 = vmatprep.subr.bf16.mxu0 0
        %1856 = vmatpush2.bf16.msra.mxu0 0
        %1857 = vmatprep.subr.bf16.mxu0 0
        %1858 = vmatpush2.bf16.msra.mxu0 0
        %1859 = vmatprep.subr.bf16.mxu0 0
        %1860 = vmatpush2.bf16.msra.mxu0 0
        %1861 = vmatprep.subr.bf16.mxu0 0
        %1862 = vmatpush2.bf16.msra.mxu0 0
        %1863 = vmatprep.subr.bf16.mxu0 0
        %1864 = vmatpush2.bf16.msra.mxu0 0
        %1865 = vmatprep.subr.bf16.mxu0 0
        %1866 = vmatpush2.bf16.msra.mxu0 0
        %1867 = vmatprep.mubr.bf16.mxu0 0
        %1868 = vmatmul.mubr.bf16.gmra.mxu0 %v1785
        %v1869 = vpop.f32.mrf.mxu0
        %v1870 = vadd.f32 0.0, %v1869
        %v1871 = vpop.f32.mrf.mxu0
        %v1872 = vpop.f32.mrf.mxu0
        %v1873 = vpop.f32.mrf.mxu0
        %1874 = vdwg.mxu0
        %v1875 = vadd.f32 %v1737, %v1870
        %v1876 = vld [vmem:[%s9 + $0x3] sm:$0x1]
        %v1877 = vlaneseq
        %v1878 = vshrl.u32 %v1877, 7
        %v1879 = vsub.s32 0, %v1878
        %v1880 = vrot.slane %v1876, %v1879
        %v1881 = vadd.f32 %v1875, %v1880
        %v1882 = vmax.f32 %v1881, 0.0
        %1883 = vst [vmem:[%s497] sm:$0xff] %v1882
        %s1884 = sand.u32 %s301, 1
        %s1885 = scalar_lea.sflag [#allocation3], %s1884
        %s1886 = sand.u32 %s301, 1
        %s1887 = smul.addr %s1886, 8
        %s1888 = scalar_lea.vmem [#allocation2], %s1887
        // Predicated region
        $region61: #{relation_gcn.1} parent=59 // pred_check
          %p1889 = pneg %p311
        $region62: #{relation_gcn.1} parent=59 // pred_check_branch
          %1891 = sbr.rel (%p1889) target = $region64
        $region63: #{relation_gcn.1} parent=59 // pred_region
          %s1893 = ssub.s32 128, 128
          %1894 = vsyncadd %s1885, %s1893
          %s1895 = sadd.s32 %s29, %s28
          %s1896 = smul.addr %s1895, 128
          %s1897 = scalar_lea.hbm %s10, %s1896
          %s1899 = sshll.u32 %s1888, 4
          %s1900 = int_to_ptr.vmem [resolvable:$true] %s1899
          %1902 = dma.vmem_to_hbm [thread:$0]  %s1900, 128, %s1897, %s1885
        $region64: #{relation_gcn.1} parent=59 // pred_fallthru
          _
      $region60: #{relation_gcn.1} parent=5 // pred_fallthru
        _
      %p1903 = scmp.le.s32.totalorder 2, %s19
      // Predicated region
      $region65: #{relation_gcn.1} parent=5 // pred_check
        %p1904 = pneg %p1903
      $region66: #{relation_gcn.1} parent=5 // pred_check_branch
        %1906 = sbr.rel (%p1904) target = $region68
      $region67: #{relation_gcn.1} parent=5 // pred_region
        %s1907 = ssub.s32 %s19, 2
        // Predicated region
        $region69: #{relation_gcn.1} parent=67 // pred_check
          %p1908 = pneg %p317
        $region70: #{relation_gcn.1} parent=67 // pred_check_branch
          %1910 = sbr.rel (%p1908) target = $region72
        $region71: #{relation_gcn.1} parent=67 // pred_region
          %s1911 = sand.u32 %s302, 1
          %s1912 = scalar_lea.sflag [#allocation3], %s1911
          %s1913 = sand.u32 %s302, 1
          %s1914 = smul.addr %s1913, 8
          %s1915 = scalar_lea.vmem [#allocation2], %s1914
          %1916 = dma.done %s1912, 128
        $region72: #{relation_gcn.1} parent=67 // pred_fallthru
          _
      $region68: #{relation_gcn.1} parent=5 // pred_fallthru
        _
    $region6: #{relation_gcn.1} parent=1 // loop_footer
      %s23 = sadd.s32 1, %s19
    $region7: #{relation_gcn.1} parent=1 // loop_footer_branch
      %18 = sbr.rel target = $region3
    $region8: #{relation_gcn.1} parent=1 // loop_exit
      _
    %1917 = vsyncpa [#allocation3], 1
    %s1918 = scalar_lea.sflag [#allocation3], 1
    %1919 = vsyncpa %s1918, 1

</llo_original>
